<compile_context>
chip_gen: v7x
topology: tpu7x:2x2x1
jax: 0.10.0
libtpu: 0.0.40
codegen_flags: <defaults>
</compile_context>

<pallas_src>
import functools

import jax
import jax.numpy as jnp
from jax.experimental import pallas as pl
from jax.experimental.pallas import tpu as pltpu


def _ceil_to(x, m):
    return (x + m - 1) // m * m


def conv_model_kernel(B, L, k1, k2, xg_ref, w1_ref, b1_ref, w2_ref, b2_ref,
                      wl1_ref, bl1_ref, gamma_ref, beta_ref, wl2_ref, bl2_ref,
                      out_ref):
    N = B * L                       # flattened batch*time rows (multiple of 8)
    L2 = L - (k1 - 1) - (k2 - 1)    # valid conv2 positions per example
    C1P = w1_ref.shape[2]           # conv1 out channels (padded to 128)
    C2P = w2_ref.shape[2]           # conv2 out channels (padded to 128)

    x = xg_ref[...]                 # (N, E) bf16 gathered embeddings

    # ---- Conv1d(E -> C1, k=k1) + ReLU over the flattened buffer.
    # h1[t] = sum_j x[t+j] @ W1[j]: compute each tap's matmul for all rows,
    # then align it with a sublane roll (result[i] = p[(i + j) % N]).  Rows
    # whose window crosses a batch boundary hold garbage; masked at the pool.
    acc1 = jnp.dot(x, w1_ref[0], preferred_element_type=jnp.float32)
    for j in range(1, k1):
        p = jnp.dot(x, w1_ref[j], preferred_element_type=jnp.float32)
        acc1 = acc1 + pltpu.roll(p, shift=N - j, axis=0)
    h1 = jnp.maximum(acc1 + b1_ref[...], 0.0).astype(jnp.bfloat16)   # (N, C1P)

    # ---- Conv1d(C1 -> C2, k=k2) + ReLU, same per-tap scheme.
    acc2 = jnp.dot(h1, w2_ref[0], preferred_element_type=jnp.float32)
    for j in range(1, k2):
        p = jnp.dot(h1, w2_ref[j], preferred_element_type=jnp.float32)
        acc2 = acc2 + pltpu.roll(p, shift=N - j, axis=0)
    h2 = jnp.maximum(acc2 + b2_ref[...], 0.0)                        # (N, C2P)

    # ---- MaxPool1d over the whole valid time axis.  Mask the rows whose conv
    # windows crossed a batch boundary (pos >= L2); ReLU keeps valid values
    # >= 0 so any negative fill value works.
    pos = jax.lax.broadcasted_iota(jnp.int32, (N, C2P), 0) % L
    h2m = jnp.where(pos < L2, h2, jnp.float32(-1.0))
    feat = jnp.max(h2m.reshape(B, L, C2P), axis=1)                   # (B, C2P)

    # ---- Linear(C2 -> 4*C2)
    z1 = jnp.dot(feat.astype(jnp.bfloat16), wl1_ref[...],
                 preferred_element_type=jnp.float32) + bl1_ref[...]

    # ---- BatchNorm1d with training-mode batch statistics (biased variance),
    # matching nn.BatchNorm1d in its default train() state.
    # TODO(synk): for eval()-mode parity pass running_mean/running_var as two
    # extra (1, 4*C2) inputs and normalize with those instead.
    mean = jnp.mean(z1, axis=0, keepdims=True)
    ctr = z1 - mean
    var = jnp.mean(ctr * ctr, axis=0, keepdims=True)
    z1n = ctr * jax.lax.rsqrt(var + 1e-5) * gamma_ref[...] + beta_ref[...]

    # ---- Linear(4*C2 -> 6, zero-padded to 128 lanes) + Sigmoid.
    z2 = jnp.dot(z1n.astype(jnp.bfloat16), wl2_ref[...],
                 preferred_element_type=jnp.float32) + bl2_ref[...]
    out_ref[...] = jax.nn.sigmoid(z2)                                # (B, 128)


def conv_model_forward(X, params):
    """X: (B, L) int32 token ids.  Returns (B, 6) float32 sigmoid outputs."""
    (emb, w1, b1, w2, b2, wl1, bl1, gamma, beta, wl2, bl2) = params
    B, L = X.shape
    E = emb.shape[1]
    k1, _, c1 = w1.shape
    k2, _, c2 = w2.shape
    nlab = wl2.shape[1]

    # Lane-dense channel padding (zero rows/columns are exact no-ops).
    C1P = _ceil_to(max(c1, 128), 128)
    C2P = _ceil_to(max(c2, 128), 128)
    NP = _ceil_to(max(nlab, 128), 128)

    # Embedding gather hoisted out of the kernel: a plain XLA gather keeps the
    # 1 MiB f32 table in HBM; the kernel only sees (B*L, E) bf16 activations.
    xg = jnp.take(emb, X.reshape(-1).astype(jnp.int32), axis=0)
    xg = xg.astype(jnp.bfloat16)

    # Conv weights kept as (k, C_in, C_out); PyTorch (C_out, C_in, k) maps here
    # via transpose(2, 1, 0).  bf16 MXU operands, f32 accumulation in-kernel.
    w1p = jnp.pad(w1, ((0, 0), (0, 0), (0, C1P - c1))).astype(jnp.bfloat16)
    b1p = jnp.pad(b1, ((0, 0), (0, C1P - c1)))
    w2p = jnp.pad(w2, ((0, 0), (0, C1P - c1), (0, C2P - c2))).astype(jnp.bfloat16)
    b2p = jnp.pad(b2, ((0, 0), (0, C2P - c2)))
    wl1p = jnp.pad(wl1, ((0, C2P - c2), (0, 0))).astype(jnp.bfloat16)
    wl2p = jnp.pad(wl2, ((0, 0), (0, NP - nlab))).astype(jnp.bfloat16)
    bl2p = jnp.pad(bl2, ((0, 0), (0, NP - nlab)))

    kernel = functools.partial(conv_model_kernel, B, L, k1, k2)
    vmem = pl.BlockSpec(memory_space=pltpu.MemorySpace.VMEM)
    inputs = (xg, w1p, b1p, w2p, b2p, wl1p, bl1, gamma, beta, wl2p, bl2p)

    out = pl.pallas_call(
        kernel,
        out_shape=jax.ShapeDtypeStruct((B, NP), jnp.float32),
        # Whole-array residency: the padded working set is ~0.5 MiB, far under
        # every scoped-VMEM default (16 MiB v5e, 32 MiB v6e, 32-of-64 MiB v7x),
        # so a grid/tiling would only add per-step overhead at these shapes.
        # TODO(synk): if vocab/B*L ever grow, keep emb in HBM (it already is)
        # and add a leading "parallel" batch grid axis for v7x's second TC.
        in_specs=[vmem] * len(inputs),
        out_specs=vmem,
    )(*inputs)
    return out[:, :nlab]


def make_params(key, vocab_size, pad_idx):
    emb_size = int(vocab_size ** 0.5)
    c1 = emb_size + 32
    c2 = emb_size + 64
    h = c2 * 4
    ks = jax.random.split(key, 9)
    s = 0.1

    emb = s * jax.random.normal(ks[0], (vocab_size, emb_size), jnp.float32)
    emb = emb.at[pad_idx].set(0.0)                   # padding_idx row is zero

    w1 = s * jax.random.normal(ks[1], (5, emb_size, c1), jnp.float32)
    b1 = s * jax.random.normal(ks[2], (1, c1), jnp.float32)
    w2 = s * jax.random.normal(ks[3], (3, c1, c2), jnp.float32)
    b2 = s * jax.random.normal(ks[4], (1, c2), jnp.float32)

    wl1 = s * jax.random.normal(ks[5], (c2, h), jnp.float32)
    bl1 = s * jax.random.normal(ks[6], (1, h), jnp.float32)
    gamma = jnp.ones((1, h), jnp.float32)            # BatchNorm affine init
    beta = jnp.zeros((1, h), jnp.float32)
    wl2 = s * jax.random.normal(ks[7], (h, 6), jnp.float32)
    bl2 = s * jax.random.normal(ks[8], (1, 6), jnp.float32)

    return (emb, w1, b1, w2, b2, wl1, bl1, gamma, beta, wl2, bl2)


if __name__ == "__main__":
    # Shapes consistent with the module's constructor arithmetic:
    vocab_size = 4096        # emb_size = int(sqrt(4096)) = 64 -> C1=96, C2=128
    sent_max_len = 16        # conv1 out length 12, conv2 out length 10
    pad_idx = 0
    batch = 4                # B*L = 64 rows, (8,128)-tile aligned

    key = jax.random.PRNGKey(0)
    k_params, k_x = jax.random.split(key)
    params = make_params(k_params, vocab_size, pad_idx)
    X = jax.random.randint(k_x, (batch, sent_max_len), 0, vocab_size,
                           dtype=jnp.int32)

    fwd = jax.jit(conv_model_forward)
    out = jax.block_until_ready(fwd(X, params))
    assert out.shape == (batch, 6)
    assert bool(jnp.all(jnp.isfinite(out)))
    print("KERNEL_OK")
</pallas_src>

<mosaic_0001>
module attributes {stable_mosaic.version = 11 : i64} {
  func.func @conv_model_kernel(%arg0: memref<64x64xbf16, #tpu.memory_space<vmem>>, %arg1: memref<5x64x128xbf16, #tpu.memory_space<vmem>>, %arg2: memref<1x128xf32, #tpu.memory_space<vmem>>, %arg3: memref<3x128x128xbf16, #tpu.memory_space<vmem>>, %arg4: memref<1x128xf32, #tpu.memory_space<vmem>>, %arg5: memref<128x512xbf16, #tpu.memory_space<vmem>>, %arg6: memref<1x512xf32, #tpu.memory_space<vmem>>, %arg7: memref<1x512xf32, #tpu.memory_space<vmem>>, %arg8: memref<1x512xf32, #tpu.memory_space<vmem>>, %arg9: memref<512x128xbf16, #tpu.memory_space<vmem>>, %arg10: memref<1x128xf32, #tpu.memory_space<vmem>>, %arg11: memref<4x128xf32, #tpu.memory_space<vmem>>) attributes {dimension_semantics = [], scalar_prefetch = 0 : i64, scratch_operands = 0 : i64, tpu.core_type = #tpu.core_type<tc>} {
    %c0 = arith.constant 0 : index
    %c0_0 = arith.constant 0 : index
    %0 = vector.load %arg0[%c0, %c0_0] : memref<64x64xbf16, #tpu.memory_space<vmem>>, vector<64x64xbf16>
    %c0_1 = arith.constant 0 : index
    %c0_2 = arith.constant 0 : index
    %c0_3 = arith.constant 0 : index
    %1 = vector.load %arg1[%c0_1, %c0_2, %c0_3] : memref<5x64x128xbf16, #tpu.memory_space<vmem>>, vector<1x64x128xbf16>
    %2 = vector.shape_cast %1 : vector<1x64x128xbf16> to vector<64x128xbf16>
    %cst = arith.constant dense<0.000000e+00> : vector<64x128xf32>
    %3 = tpu.matmul %0, %2, %cst {dimension_numbers = #tpu.dot_dimension_numbers<[1], [0], [0], [1], [0, 0, 1, 1], [], []>} : vector<64x64xbf16>, vector<64x128xbf16>, vector<64x128xf32> -> vector<64x128xf32>
    %c1 = arith.constant 1 : index
    %c0_4 = arith.constant 0 : index
    %c0_5 = arith.constant 0 : index
    %4 = vector.load %arg1[%c1, %c0_4, %c0_5] : memref<5x64x128xbf16, #tpu.memory_space<vmem>>, vector<1x64x128xbf16>
    %5 = vector.shape_cast %4 : vector<1x64x128xbf16> to vector<64x128xbf16>
    %cst_6 = arith.constant dense<0.000000e+00> : vector<64x128xf32>
    %6 = tpu.matmul %0, %5, %cst_6 {dimension_numbers = #tpu.dot_dimension_numbers<[1], [0], [0], [1], [0, 0, 1, 1], [], []>} : vector<64x64xbf16>, vector<64x128xbf16>, vector<64x128xf32> -> vector<64x128xf32>
    %c63_i32 = arith.constant 63 : i32
    %7 = tpu.dynamic_rotate %6 by %c63_i32 dim 0 : vector<64x128xf32>, i32 -> vector<64x128xf32>
    %8 = arith.addf %3, %7 : vector<64x128xf32>
    %c2 = arith.constant 2 : index
    %c0_7 = arith.constant 0 : index
    %c0_8 = arith.constant 0 : index
    %9 = vector.load %arg1[%c2, %c0_7, %c0_8] : memref<5x64x128xbf16, #tpu.memory_space<vmem>>, vector<1x64x128xbf16>
    %10 = vector.shape_cast %9 : vector<1x64x128xbf16> to vector<64x128xbf16>
    %cst_9 = arith.constant dense<0.000000e+00> : vector<64x128xf32>
    %11 = tpu.matmul %0, %10, %cst_9 {dimension_numbers = #tpu.dot_dimension_numbers<[1], [0], [0], [1], [0, 0, 1, 1], [], []>} : vector<64x64xbf16>, vector<64x128xbf16>, vector<64x128xf32> -> vector<64x128xf32>
    %c62_i32 = arith.constant 62 : i32
    %12 = tpu.dynamic_rotate %11 by %c62_i32 dim 0 : vector<64x128xf32>, i32 -> vector<64x128xf32>
    %13 = arith.addf %8, %12 : vector<64x128xf32>
    %c3 = arith.constant 3 : index
    %c0_10 = arith.constant 0 : index
    %c0_11 = arith.constant 0 : index
    %14 = vector.load %arg1[%c3, %c0_10, %c0_11] : memref<5x64x128xbf16, #tpu.memory_space<vmem>>, vector<1x64x128xbf16>
    %15 = vector.shape_cast %14 : vector<1x64x128xbf16> to vector<64x128xbf16>
    %cst_12 = arith.constant dense<0.000000e+00> : vector<64x128xf32>
    %16 = tpu.matmul %0, %15, %cst_12 {dimension_numbers = #tpu.dot_dimension_numbers<[1], [0], [0], [1], [0, 0, 1, 1], [], []>} : vector<64x64xbf16>, vector<64x128xbf16>, vector<64x128xf32> -> vector<64x128xf32>
    %c61_i32 = arith.constant 61 : i32
    %17 = tpu.dynamic_rotate %16 by %c61_i32 dim 0 : vector<64x128xf32>, i32 -> vector<64x128xf32>
    %18 = arith.addf %13, %17 : vector<64x128xf32>
    %c4 = arith.constant 4 : index
    %c0_13 = arith.constant 0 : index
    %c0_14 = arith.constant 0 : index
    %19 = vector.load %arg1[%c4, %c0_13, %c0_14] : memref<5x64x128xbf16, #tpu.memory_space<vmem>>, vector<1x64x128xbf16>
    %20 = vector.shape_cast %19 : vector<1x64x128xbf16> to vector<64x128xbf16>
    %cst_15 = arith.constant dense<0.000000e+00> : vector<64x128xf32>
    %21 = tpu.matmul %0, %20, %cst_15 {dimension_numbers = #tpu.dot_dimension_numbers<[1], [0], [0], [1], [0, 0, 1, 1], [], []>} : vector<64x64xbf16>, vector<64x128xbf16>, vector<64x128xf32> -> vector<64x128xf32>
    %c60_i32 = arith.constant 60 : i32
    %22 = tpu.dynamic_rotate %21 by %c60_i32 dim 0 : vector<64x128xf32>, i32 -> vector<64x128xf32>
    %23 = arith.addf %18, %22 : vector<64x128xf32>
    %c0_16 = arith.constant 0 : index
    %c0_17 = arith.constant 0 : index
    %24 = vector.load %arg2[%c0_16, %c0_17] : memref<1x128xf32, #tpu.memory_space<vmem>>, vector<1x128xf32>
    %25 = vector.broadcast %24 : vector<1x128xf32> to vector<64x128xf32>
    %26 = arith.addf %23, %25 : vector<64x128xf32>
    %cst_18 = arith.constant 0.000000e+00 : f32
    %27 = vector.broadcast %cst_18 : f32 to vector<64x128xf32>
    %28 = arith.maximumf %26, %27 : vector<64x128xf32>
    %29 = arith.truncf %28 : vector<64x128xf32> to vector<64x128xbf16>
    %c0_19 = arith.constant 0 : index
    %c0_20 = arith.constant 0 : index
    %c0_21 = arith.constant 0 : index
    %30 = vector.load %arg3[%c0_19, %c0_20, %c0_21] : memref<3x128x128xbf16, #tpu.memory_space<vmem>>, vector<1x128x128xbf16>
    %31 = vector.shape_cast %30 : vector<1x128x128xbf16> to vector<128x128xbf16>
    %cst_22 = arith.constant dense<0.000000e+00> : vector<64x128xf32>
    %32 = tpu.matmul %29, %31, %cst_22 {dimension_numbers = #tpu.dot_dimension_numbers<[1], [0], [0], [1], [0, 0, 1, 1], [], []>} : vector<64x128xbf16>, vector<128x128xbf16>, vector<64x128xf32> -> vector<64x128xf32>
    %c1_23 = arith.constant 1 : index
    %c0_24 = arith.constant 0 : index
    %c0_25 = arith.constant 0 : index
    %33 = vector.load %arg3[%c1_23, %c0_24, %c0_25] : memref<3x128x128xbf16, #tpu.memory_space<vmem>>, vector<1x128x128xbf16>
    %34 = vector.shape_cast %33 : vector<1x128x128xbf16> to vector<128x128xbf16>
    %cst_26 = arith.constant dense<0.000000e+00> : vector<64x128xf32>
    %35 = tpu.matmul %29, %34, %cst_26 {dimension_numbers = #tpu.dot_dimension_numbers<[1], [0], [0], [1], [0, 0, 1, 1], [], []>} : vector<64x128xbf16>, vector<128x128xbf16>, vector<64x128xf32> -> vector<64x128xf32>
    %c63_i32_27 = arith.constant 63 : i32
    %36 = tpu.dynamic_rotate %35 by %c63_i32_27 dim 0 : vector<64x128xf32>, i32 -> vector<64x128xf32>
    %37 = arith.addf %32, %36 : vector<64x128xf32>
    %c2_28 = arith.constant 2 : index
    %c0_29 = arith.constant 0 : index
    %c0_30 = arith.constant 0 : index
    %38 = vector.load %arg3[%c2_28, %c0_29, %c0_30] : memref<3x128x128xbf16, #tpu.memory_space<vmem>>, vector<1x128x128xbf16>
    %39 = vector.shape_cast %38 : vector<1x128x128xbf16> to vector<128x128xbf16>
    %cst_31 = arith.constant dense<0.000000e+00> : vector<64x128xf32>
    %40 = tpu.matmul %29, %39, %cst_31 {dimension_numbers = #tpu.dot_dimension_numbers<[1], [0], [0], [1], [0, 0, 1, 1], [], []>} : vector<64x128xbf16>, vector<128x128xbf16>, vector<64x128xf32> -> vector<64x128xf32>
    %c62_i32_32 = arith.constant 62 : i32
    %41 = tpu.dynamic_rotate %40 by %c62_i32_32 dim 0 : vector<64x128xf32>, i32 -> vector<64x128xf32>
    %42 = arith.addf %37, %41 : vector<64x128xf32>
    %c0_33 = arith.constant 0 : index
    %c0_34 = arith.constant 0 : index
    %43 = vector.load %arg4[%c0_33, %c0_34] : memref<1x128xf32, #tpu.memory_space<vmem>>, vector<1x128xf32>
    %44 = vector.broadcast %43 : vector<1x128xf32> to vector<64x128xf32>
    %45 = arith.addf %42, %44 : vector<64x128xf32>
    %cst_35 = arith.constant 0.000000e+00 : f32
    %46 = vector.broadcast %cst_35 : f32 to vector<64x128xf32>
    %47 = arith.maximumf %45, %46 : vector<64x128xf32>
    %48 = tpu.iota {dimensions = array<i32: 0>} : vector<64x128xi32>
    %c16_i32 = arith.constant 16 : i32
    %c0_i32 = arith.constant 0 : i32
    %49 = arith.cmpi eq, %c16_i32, %c0_i32 : i32
    %c1_i32 = arith.constant 1 : i32
    %50 = arith.select %49, %c1_i32, %c16_i32 : i32
    %51 = vector.broadcast %50 : i32 to vector<64x128xi32>
    %52 = arith.remsi %48, %51 : vector<64x128xi32>
    %c0_i32_36 = arith.constant 0 : i32
    %53 = vector.broadcast %c0_i32_36 : i32 to vector<64x128xi32>
    %54 = arith.cmpi ne, %52, %53 : vector<64x128xi32>
    %c0_i32_37 = arith.constant 0 : i32
    %55 = vector.broadcast %c0_i32_37 : i32 to vector<64x128xi32>
    %56 = arith.cmpi slt, %52, %55 : vector<64x128xi32>
    %c0_i32_38 = arith.constant 0 : i32
    %57 = arith.cmpi slt, %50, %c0_i32_38 : i32
    %58 = vector.broadcast %57 : i1 to vector<64x128xi1>
    %59 = vector.broadcast %58 : vector<64x128xi1> to vector<64x128xi1>
    %60 = arith.xori %56, %59 : vector<64x128xi1>
    %61 = arith.andi %60, %54 : vector<64x128xi1>
    %62 = vector.broadcast %50 : i32 to vector<64x128xi32>
    %63 = arith.addi %52, %62 : vector<64x128xi32>
    %64 = arith.select %61, %63, %52 : vector<64x128xi1>, vector<64x128xi32>
    %c10_i32 = arith.constant 10 : i32
    %65 = vector.broadcast %c10_i32 : i32 to vector<64x128xi32>
    %66 = arith.cmpi slt, %64, %65 : vector<64x128xi32>
    %cst_39 = arith.constant -1.000000e+00 : f32
    %67 = vector.broadcast %cst_39 : f32 to vector<64x128xf32>
    %68 = arith.select %66, %47, %67 : vector<64x128xi1>, vector<64x128xf32>
    %69 = vector.shape_cast %68 : vector<64x128xf32> to vector<4x16x128xf32>
    %cst_40 = arith.constant dense<0xFF800000> : vector<4x128xf32>
    %70 = vector.multi_reduction <maximumf>, %69, %cst_40 [1] : vector<4x16x128xf32> to vector<4x128xf32>
    %71 = arith.truncf %70 : vector<4x128xf32> to vector<4x128xbf16>
    %c0_41 = arith.constant 0 : index
    %c0_42 = arith.constant 0 : index
    %72 = vector.load %arg5[%c0_41, %c0_42] : memref<128x512xbf16, #tpu.memory_space<vmem>>, vector<128x512xbf16>
    %cst_43 = arith.constant dense<0.000000e+00> : vector<4x512xf32>
    %73 = tpu.matmul %71, %72, %cst_43 {dimension_numbers = #tpu.dot_dimension_numbers<[1], [0], [0], [1], [0, 0, 1, 1], [], []>} : vector<4x128xbf16>, vector<128x512xbf16>, vector<4x512xf32> -> vector<4x512xf32>
    %c0_44 = arith.constant 0 : index
    %c0_45 = arith.constant 0 : index
    %74 = vector.load %arg6[%c0_44, %c0_45] : memref<1x512xf32, #tpu.memory_space<vmem>>, vector<1x512xf32>
    %75 = vector.broadcast %74 : vector<1x512xf32> to vector<4x512xf32>
    %76 = arith.addf %73, %75 : vector<4x512xf32>
    %cst_46 = arith.constant dense<0.000000e+00> : vector<512xf32>
    %77 = vector.multi_reduction <add>, %76, %cst_46 [0] : vector<4x512xf32> to vector<512xf32>
    %78 = vector.shape_cast %77 : vector<512xf32> to vector<1x512xf32>
    %cst_47 = arith.constant 4.000000e+00 : f32
    %79 = vector.broadcast %cst_47 : f32 to vector<1x512xf32>
    %80 = arith.divf %78, %79 : vector<1x512xf32>
    %81 = vector.broadcast %80 : vector<1x512xf32> to vector<4x512xf32>
    %82 = arith.subf %76, %81 : vector<4x512xf32>
    %83 = arith.mulf %82, %82 : vector<4x512xf32>
    %cst_48 = arith.constant dense<0.000000e+00> : vector<512xf32>
    %84 = vector.multi_reduction <add>, %83, %cst_48 [0] : vector<4x512xf32> to vector<512xf32>
    %85 = vector.shape_cast %84 : vector<512xf32> to vector<1x512xf32>
    %cst_49 = arith.constant 4.000000e+00 : f32
    %86 = vector.broadcast %cst_49 : f32 to vector<1x512xf32>
    %87 = arith.divf %85, %86 : vector<1x512xf32>
    %cst_50 = arith.constant 9.99999974E-6 : f32
    %88 = vector.broadcast %cst_50 : f32 to vector<1x512xf32>
    %89 = arith.addf %87, %88 : vector<1x512xf32>
    %90 = math.rsqrt %89 : vector<1x512xf32>
    %91 = vector.broadcast %90 : vector<1x512xf32> to vector<4x512xf32>
    %92 = arith.mulf %82, %91 : vector<4x512xf32>
    %c0_51 = arith.constant 0 : index
    %c0_52 = arith.constant 0 : index
    %93 = vector.load %arg7[%c0_51, %c0_52] : memref<1x512xf32, #tpu.memory_space<vmem>>, vector<1x512xf32>
    %94 = vector.broadcast %93 : vector<1x512xf32> to vector<4x512xf32>
    %95 = arith.mulf %92, %94 : vector<4x512xf32>
    %c0_53 = arith.constant 0 : index
    %c0_54 = arith.constant 0 : index
    %96 = vector.load %arg8[%c0_53, %c0_54] : memref<1x512xf32, #tpu.memory_space<vmem>>, vector<1x512xf32>
    %97 = vector.broadcast %96 : vector<1x512xf32> to vector<4x512xf32>
    %98 = arith.addf %95, %97 : vector<4x512xf32>
    %99 = arith.truncf %98 : vector<4x512xf32> to vector<4x512xbf16>
    %c0_55 = arith.constant 0 : index
    %c0_56 = arith.constant 0 : index
    %100 = vector.load %arg9[%c0_55, %c0_56] : memref<512x128xbf16, #tpu.memory_space<vmem>>, vector<512x128xbf16>
    %cst_57 = arith.constant dense<0.000000e+00> : vector<4x128xf32>
    %101 = tpu.matmul %99, %100, %cst_57 {dimension_numbers = #tpu.dot_dimension_numbers<[1], [0], [0], [1], [0, 0, 1, 1], [], []>} : vector<4x512xbf16>, vector<512x128xbf16>, vector<4x128xf32> -> vector<4x128xf32>
    %c0_58 = arith.constant 0 : index
    %c0_59 = arith.constant 0 : index
    %102 = vector.load %arg10[%c0_58, %c0_59] : memref<1x128xf32, #tpu.memory_space<vmem>>, vector<1x128xf32>
    %103 = vector.broadcast %102 : vector<1x128xf32> to vector<4x128xf32>
    %104 = arith.addf %101, %103 : vector<4x128xf32>
    %105 = arith.negf %104 : vector<4x128xf32>
    %106 = math.exp %105 : vector<4x128xf32>
    %cst_60 = arith.constant 1.000000e+00 : f32
    %107 = vector.broadcast %cst_60 : f32 to vector<4x128xf32>
    %108 = arith.addf %107, %106 : vector<4x128xf32>
    %109 = arith.divf %107, %108 : vector<4x128xf32>
    %c0_61 = arith.constant 0 : index
    %c0_62 = arith.constant 0 : index
    %110 = vector.load %arg11[%c0_61, %c0_62] : memref<4x128xf32, #tpu.memory_space<vmem>>, vector<4x128xf32>
    tpu.vector_store %arg11[%c0_61, %c0_62], %109 {strides = array<i32>} : memref<4x128xf32, #tpu.memory_space<vmem>>, vector<4x128xf32>,
    return
  }
}

</mosaic_0001>

<llo_original>
// kernel: conv_model_forward.1
$region0: #{conv_model_forward.1}
  #allocation0 [shape = 'u32[]', space=smem, size = 0x4, offset = 0x4, fixed_abs, tag = 'smem constant byte address 0x4 - core index']
  #allocation1 [shape = 'u32[144,128]{1,0:T(1,128)}', space=vmem, size = 0x12000, scoped, tag = 'internal scratch']
  %s0 = inlined_call_operand.vmem [shape: bf16[64,64], index: 0, kind: input, shape index: {}]
  %s1 = inlined_call_operand.vmem [shape: bf16[5,64,128], index: 1, kind: input, shape index: {}]
  %s2 = inlined_call_operand.vmem [shape: f32[1,128], index: 2, kind: input, shape index: {}]
  %s3 = inlined_call_operand.vmem [shape: bf16[3,128,128], index: 3, kind: input, shape index: {}]
  %s4 = inlined_call_operand.vmem [shape: f32[1,128], index: 4, kind: input, shape index: {}]
  %s5 = inlined_call_operand.vmem [shape: bf16[128,512], index: 5, kind: input, shape index: {}]
  %s6 = inlined_call_operand.vmem [shape: f32[1,512], index: 6, kind: input, shape index: {}]
  %s7 = inlined_call_operand.vmem [shape: f32[1,512], index: 7, kind: input, shape index: {}]
  %s8 = inlined_call_operand.vmem [shape: f32[1,512], index: 8, kind: input, shape index: {}]
  %s9 = inlined_call_operand.vmem [shape: bf16[512,128], index: 9, kind: input, shape index: {}]
  %s10 = inlined_call_operand.vmem [shape: f32[1,128], index: 10, kind: input, shape index: {}]
  %s11 = inlined_call_operand.hbm [shape: f32[4,128], index: 11, kind: output, shape index: {}]
  %s12 = sld [smem:[#allocation0]]
  $region54: #{conv_model_forward.1} parent=0
    _
  %s14 = ssub.s32 1, %s12
  %s15 = scalar_select 0, %s14, %s12
  $region1: #{conv_model_forward.1} parent=0
    #allocation2 [shape = 'u8[2048]{0}', space=vmem, size = 0x800, scoped, tag = 'output window, operand 0, single buffered']
    #allocation3 [shape = 's32[1]{0}', space=sflag, size = 0x4, scoped, tag = 'scoped memory for conv_model_forward.1']
    %16 = vsyncpa [#allocation3], 0
    // Predicated region
    $region2: #{conv_model_forward.1} parent=1 // pred_check
      _
    $region3: #{conv_model_forward.1} parent=1 // pred_check_branch
      %18 = sbr.rel (0) target = $region5
    $region4: #{conv_model_forward.1} parent=1 // pred_region
      _
    $region5: #{conv_model_forward.1} parent=1 // pred_fallthru
      _
    // Predicated region
    $region6: #{conv_model_forward.1} parent=1 // pred_check
      _
    $region7: #{conv_model_forward.1} parent=1 // pred_check_branch
      %20 = sbr.rel (0) target = $region9
    $region8: #{conv_model_forward.1} parent=1 // pred_region
      _
    $region9: #{conv_model_forward.1} parent=1 // pred_fallthru
      _
    // Predicated region
    $region10: #{conv_model_forward.1} parent=1 // pred_check
      _
    $region11: #{conv_model_forward.1} parent=1 // pred_check_branch
      %22 = sbr.rel (0) target = $region13
    $region12: #{conv_model_forward.1} parent=1 // pred_region
      _
    $region13: #{conv_model_forward.1} parent=1 // pred_fallthru
      _
    // Predicated region
    $region14: #{conv_model_forward.1} parent=1 // pred_check
      _
    $region15: #{conv_model_forward.1} parent=1 // pred_check_branch
      %24 = sbr.rel (0) target = $region17
    $region16: #{conv_model_forward.1} parent=1 // pred_region
      _
    $region17: #{conv_model_forward.1} parent=1 // pred_fallthru
      _
    // Predicated region
    $region18: #{conv_model_forward.1} parent=1 // pred_check
      _
    $region19: #{conv_model_forward.1} parent=1 // pred_check_branch
      %26 = sbr.rel (0) target = $region21
    $region20: #{conv_model_forward.1} parent=1 // pred_region
      _
    $region21: #{conv_model_forward.1} parent=1 // pred_fallthru
      _
    // Predicated region
    $region22: #{conv_model_forward.1} parent=1 // pred_check
      _
    $region23: #{conv_model_forward.1} parent=1 // pred_check_branch
      %28 = sbr.rel (0) target = $region25
    $region24: #{conv_model_forward.1} parent=1 // pred_region
      _
    $region25: #{conv_model_forward.1} parent=1 // pred_fallthru
      _
    // Predicated region
    $region26: #{conv_model_forward.1} parent=1 // pred_check
      _
    $region27: #{conv_model_forward.1} parent=1 // pred_check_branch
      %30 = sbr.rel (0) target = $region29
    $region28: #{conv_model_forward.1} parent=1 // pred_region
      _
    $region29: #{conv_model_forward.1} parent=1 // pred_fallthru
      _
    // Predicated region
    $region30: #{conv_model_forward.1} parent=1 // pred_check
      _
    $region31: #{conv_model_forward.1} parent=1 // pred_check_branch
      %32 = sbr.rel (0) target = $region33
    $region32: #{conv_model_forward.1} parent=1 // pred_region
      _
    $region33: #{conv_model_forward.1} parent=1 // pred_fallthru
      _
    // Predicated region
    $region34: #{conv_model_forward.1} parent=1 // pred_check
      _
    $region35: #{conv_model_forward.1} parent=1 // pred_check_branch
      %34 = sbr.rel (0) target = $region37
    $region36: #{conv_model_forward.1} parent=1 // pred_region
      _
    $region37: #{conv_model_forward.1} parent=1 // pred_fallthru
      _
    // Predicated region
    $region38: #{conv_model_forward.1} parent=1 // pred_check
      _
    $region39: #{conv_model_forward.1} parent=1 // pred_check_branch
      %36 = sbr.rel (0) target = $region41
    $region40: #{conv_model_forward.1} parent=1 // pred_region
      _
    $region41: #{conv_model_forward.1} parent=1 // pred_fallthru
      _
    // Predicated region
    $region42: #{conv_model_forward.1} parent=1 // pred_check
      _
    $region43: #{conv_model_forward.1} parent=1 // pred_check_branch
      %38 = sbr.rel (0) target = $region45
    $region44: #{conv_model_forward.1} parent=1 // pred_region
      _
    $region45: #{conv_model_forward.1} parent=1 // pred_fallthru
      _
    %v40 = vld [vmem:[%s0] sm:$0xf]
    %v41 = vld [vmem:[%s0 + $0x4] sm:$0xf]
    %v42 = vld [vmem:[%s0 + $0x8] sm:$0xf]
    %v43 = vld [vmem:[%s0 + $0xc] sm:$0xf]
    %v44 = vld [vmem:[%s0 + $0x10] sm:$0xf]
    %v45 = vld [vmem:[%s0 + $0x14] sm:$0xf]
    %v46 = vld [vmem:[%s0 + $0x18] sm:$0xf]
    %v47 = vld [vmem:[%s0 + $0x1c] sm:$0xf]
    %v48 = vld [vmem:[%s1] sm:$0xf]
    %v49 = vld [vmem:[%s1 + $0x4] sm:$0xf]
    %v50 = vld [vmem:[%s1 + $0x8] sm:$0xf]
    %v51 = vld [vmem:[%s1 + $0xc] sm:$0xf]
    %v52 = vld [vmem:[%s1 + $0x10] sm:$0xf]
    %v53 = vld [vmem:[%s1 + $0x14] sm:$0xf]
    %v54 = vld [vmem:[%s1 + $0x18] sm:$0xf]
    %v55 = vld [vmem:[%s1 + $0x1c] sm:$0xf]
    %s56 = scalar_lea.vmem %s1, 32
    %v57 = vld [vmem:[%s56] sm:$0xf]
    %v58 = vld [vmem:[%s56 + $0x4] sm:$0xf]
    %v59 = vld [vmem:[%s56 + $0x8] sm:$0xf]
    %v60 = vld [vmem:[%s56 + $0xc] sm:$0xf]
    %v61 = vld [vmem:[%s56 + $0x10] sm:$0xf]
    %v62 = vld [vmem:[%s56 + $0x14] sm:$0xf]
    %v63 = vld [vmem:[%s56 + $0x18] sm:$0xf]
    %v64 = vld [vmem:[%s56 + $0x1c] sm:$0xf]
    %v73 = vunpack.c.l.b16 %v40
    %v74 = vunpack.c.l.b16 %v41
    %v75 = vunpack.c.l.b16 %v42
    %v76 = vunpack.c.l.b16 %v43
    %v77 = vunpack.c.l.b16 %v44
    %v78 = vunpack.c.l.b16 %v45
    %v79 = vunpack.c.l.b16 %v46
    %v80 = vunpack.c.l.b16 %v47
    %v81 = vpack.c.b16 %v74, %v73
    %v82 = vpack.c.b16 %v76, %v75
    %v83 = vpack.c.b16 %v78, %v77
    %v84 = vpack.c.b16 %v80, %v79
    %v93 = vunpack.c.l.b16 %v57
    %v94 = vunpack.c.l.b16 %v58
    %v95 = vunpack.c.l.b16 %v59
    %v96 = vunpack.c.l.b16 %v60
    %v97 = vunpack.c.l.b16 %v61
    %v98 = vunpack.c.l.b16 %v62
    %v99 = vunpack.c.l.b16 %v63
    %v100 = vunpack.c.l.b16 %v64
    %v101 = vpack.c.b16 %v94, %v93
    %v102 = vpack.c.b16 %v96, %v95
    %v103 = vpack.c.b16 %v98, %v97
    %v104 = vpack.c.b16 %v100, %v99
    %vm109 = vcmask 523264
    %v111 = vsel %vm109, %v81, 0
    %v114 = vsel %vm109, %v82, 0
    %v117 = vsel %vm109, %v83, 0
    %v120 = vsel %vm109, %v84, 0
    %122 = vmatprep.subr.bf16.mxu0 0
    %123 = vmatpush1.bf16.msra.mxu0 %v101
    %124 = vmatprep.subr.bf16.mxu0 0
    %125 = vmatpush1.bf16.msra.mxu0 %v102
    %126 = vmatprep.subr.bf16.mxu0 0
    %127 = vmatpush1.bf16.msra.mxu0 %v103
    %128 = vmatprep.subr.bf16.mxu0 0
    %129 = vmatpush1.bf16.msra.mxu0 %v104
    %130 = vmatprep.subr.bf16.mxu0 0
    %131 = vmatpush1.bf16.msra.mxu0 0
    %132 = vmatprep.subr.bf16.mxu0 0
    %133 = vmatpush1.bf16.msra.mxu0 0
    %134 = vmatprep.subr.bf16.mxu0 0
    %135 = vmatpush1.bf16.msra.mxu0 0
    %136 = vmatprep.subr.bf16.mxu0 0
    %137 = vmatpush1.bf16.msra.mxu0 0
    %138 = vmatprep.subr.bf16.mxu0 0
    %139 = vmatpush1.bf16.msra.mxu0 0
    %140 = vmatprep.subr.bf16.mxu0 0
    %141 = vmatpush1.bf16.msra.mxu0 0
    %142 = vmatprep.subr.bf16.mxu0 0
    %143 = vmatpush1.bf16.msra.mxu0 0
    %144 = vmatprep.subr.bf16.mxu0 0
    %145 = vmatpush1.bf16.msra.mxu0 0
    %146 = vmatprep.subr.bf16.mxu0 0
    %147 = vmatpush1.bf16.msra.mxu0 0
    %148 = vmatprep.subr.bf16.mxu0 0
    %149 = vmatpush1.bf16.msra.mxu0 0
    %150 = vmatprep.subr.bf16.mxu0 0
    %151 = vmatpush1.bf16.msra.mxu0 0
    %152 = vmatprep.subr.bf16.mxu0 0
    %153 = vmatpush1.bf16.msra.mxu0 0
    %154 = vmatprep.mubr.bf16.mxu0 0
    %155 = vmatmul.mubr.bf16.gmra.mrb[0].mxu0 %v111
    %v156 = vpop.f32.mrb[0].mxu0
    %v157 = vadd.f32 0.0, %v156
    %v158 = vpop.f32.mrb[0].mxu0
    %v159 = vpop.f32.mrb[0].mxu0
    %v160 = vadd.f32 0.0, %v159
    %v161 = vpop.f32.mrb[0].mxu0
    %162 = vmatprep.mubr.bf16.mxu0 0
    %163 = vmatmul.mubr.bf16.gmra.mrb[0].mxu0 %v114
    %v164 = vpop.f32.mrb[0].mxu0
    %v165 = vadd.f32 0.0, %v164
    %v166 = vpop.f32.mrb[0].mxu0
    %v167 = vpop.f32.mrb[0].mxu0
    %v168 = vadd.f32 0.0, %v167
    %v169 = vpop.f32.mrb[0].mxu0
    %170 = vmatprep.mubr.bf16.mxu0 0
    %171 = vmatmul.mubr.bf16.gmra.mrb[0].mxu0 %v117
    %v172 = vpop.f32.mrb[0].mxu0
    %v173 = vadd.f32 0.0, %v172
    %v174 = vpop.f32.mrb[0].mxu0
    %v175 = vpop.f32.mrb[0].mxu0
    %v176 = vadd.f32 0.0, %v175
    %v177 = vpop.f32.mrb[0].mxu0
    %178 = vmatprep.mubr.bf16.mxu0 0
    %179 = vmatmul.mubr.bf16.gmra.mrb[0].mxu0 %v120
    %v180 = vpop.f32.mrb[0].mxu0
    %v181 = vadd.f32 0.0, %v180
    %v182 = vpop.f32.mrb[0].mxu0
    %v183 = vpop.f32.mrb[0].mxu0
    %v184 = vadd.f32 0.0, %v183
    %v185 = vpop.f32.mrb[0].mxu0
    %186 = vdwg.mxu0
    %v187 = vrot.slane %v157, 1
    %v188 = vrot.slane %v160, 1
    %v189 = vrot.slane %v165, 1
    %v190 = vrot.slane %v168, 1
    %v191 = vrot.slane %v173, 1
    %v192 = vrot.slane %v176, 1
    %v193 = vrot.slane %v181, 1
    %v194 = vrot.slane %v184, 1
    %v195 = vlaneseq
    %v196 = vshrl.u32 %v195, 7
    %vm197 = vcmp.lt.s32.totalorder %v196, 7
    %v198 = vsel %vm197, %v193, %v194
    %v199 = vsel %vm197, %v192, %v193
    %v200 = vsel %vm197, %v191, %v192
    %v201 = vsel %vm197, %v190, %v191
    %v202 = vsel %vm197, %v189, %v190
    %v203 = vsel %vm197, %v188, %v189
    %v204 = vsel %vm197, %v187, %v188
    %v205 = vsel %vm197, %v194, %v187
    %v214 = vunpack.c.l.b16 %v48
    %v215 = vunpack.c.l.b16 %v49
    %v216 = vunpack.c.l.b16 %v50
    %v217 = vunpack.c.l.b16 %v51
    %v218 = vunpack.c.l.b16 %v52
    %v219 = vunpack.c.l.b16 %v53
    %v220 = vunpack.c.l.b16 %v54
    %v221 = vunpack.c.l.b16 %v55
    %v222 = vpack.c.b16 %v215, %v214
    %v223 = vpack.c.b16 %v217, %v216
    %v224 = vpack.c.b16 %v219, %v218
    %v225 = vpack.c.b16 %v221, %v220
    %230 = vmatprep.subr.bf16.mxu0 0
    %231 = vmatpush1.bf16.msra.mxu0 %v222
    %232 = vmatprep.subr.bf16.mxu0 0
    %233 = vmatpush1.bf16.msra.mxu0 %v223
    %234 = vmatprep.subr.bf16.mxu0 0
    %235 = vmatpush1.bf16.msra.mxu0 %v224
    %236 = vmatprep.subr.bf16.mxu0 0
    %237 = vmatpush1.bf16.msra.mxu0 %v225
    %238 = vmatprep.subr.bf16.mxu0 0
    %239 = vmatpush1.bf16.msra.mxu0 0
    %240 = vmatprep.subr.bf16.mxu0 0
    %241 = vmatpush1.bf16.msra.mxu0 0
    %242 = vmatprep.subr.bf16.mxu0 0
    %243 = vmatpush1.bf16.msra.mxu0 0
    %244 = vmatprep.subr.bf16.mxu0 0
    %245 = vmatpush1.bf16.msra.mxu0 0
    %246 = vmatprep.subr.bf16.mxu0 0
    %247 = vmatpush1.bf16.msra.mxu0 0
    %248 = vmatprep.subr.bf16.mxu0 0
    %249 = vmatpush1.bf16.msra.mxu0 0
    %250 = vmatprep.subr.bf16.mxu0 0
    %251 = vmatpush1.bf16.msra.mxu0 0
    %252 = vmatprep.subr.bf16.mxu0 0
    %253 = vmatpush1.bf16.msra.mxu0 0
    %254 = vmatprep.subr.bf16.mxu0 0
    %255 = vmatpush1.bf16.msra.mxu0 0
    %256 = vmatprep.subr.bf16.mxu0 0
    %257 = vmatpush1.bf16.msra.mxu0 0
    %258 = vmatprep.subr.bf16.mxu0 0
    %259 = vmatpush1.bf16.msra.mxu0 0
    %260 = vmatprep.subr.bf16.mxu0 0
    %261 = vmatpush1.bf16.msra.mxu0 0
    %262 = vmatprep.mubr.bf16.mxu0 0
    %263 = vmatmul.mubr.bf16.gmra.mrb[0].mxu0 %v111
    %v264 = vpop.f32.mrb[0].mxu0
    %v265 = vadd.f32 %v204, %v264
    %v266 = vpop.f32.mrb[0].mxu0
    %v267 = vpop.f32.mrb[0].mxu0
    %v268 = vadd.f32 %v203, %v267
    %v269 = vpop.f32.mrb[0].mxu0
    %270 = vmatprep.mubr.bf16.mxu0 0
    %271 = vmatmul.mubr.bf16.gmra.mrb[0].mxu0 %v114
    %v272 = vpop.f32.mrb[0].mxu0
    %v273 = vadd.f32 %v202, %v272
    %v274 = vpop.f32.mrb[0].mxu0
    %v275 = vpop.f32.mrb[0].mxu0
    %v276 = vadd.f32 %v201, %v275
    %v277 = vpop.f32.mrb[0].mxu0
    %278 = vmatprep.mubr.bf16.mxu0 0
    %279 = vmatmul.mubr.bf16.gmra.mrb[0].mxu0 %v117
    %v280 = vpop.f32.mrb[0].mxu0
    %v281 = vadd.f32 %v200, %v280
    %v282 = vpop.f32.mrb[0].mxu0
    %v283 = vpop.f32.mrb[0].mxu0
    %v284 = vadd.f32 %v199, %v283
    %v285 = vpop.f32.mrb[0].mxu0
    %286 = vmatprep.mubr.bf16.mxu0 0
    %287 = vmatmul.mubr.bf16.gmra.mrb[0].mxu0 %v120
    %v288 = vpop.f32.mrb[0].mxu0
    %v289 = vadd.f32 %v198, %v288
    %v290 = vpop.f32.mrb[0].mxu0
    %v291 = vpop.f32.mrb[0].mxu0
    %v292 = vadd.f32 %v205, %v291
    %v293 = vpop.f32.mrb[0].mxu0
    %294 = vdwg.mxu0
    %s295 = scalar_lea.vmem %s1, 64
    %v296 = vld [vmem:[%s295] sm:$0xf]
    %v297 = vld [vmem:[%s295 + $0x4] sm:$0xf]
    %v298 = vld [vmem:[%s295 + $0x8] sm:$0xf]
    %v299 = vld [vmem:[%s295 + $0xc] sm:$0xf]
    %v300 = vld [vmem:[%s295 + $0x10] sm:$0xf]
    %v301 = vld [vmem:[%s295 + $0x14] sm:$0xf]
    %v302 = vld [vmem:[%s295 + $0x18] sm:$0xf]
    %v303 = vld [vmem:[%s295 + $0x1c] sm:$0xf]
    %v312 = vunpack.c.l.b16 %v296
    %v313 = vunpack.c.l.b16 %v297
    %v314 = vunpack.c.l.b16 %v298
    %v315 = vunpack.c.l.b16 %v299
    %v316 = vunpack.c.l.b16 %v300
    %v317 = vunpack.c.l.b16 %v301
    %v318 = vunpack.c.l.b16 %v302
    %v319 = vunpack.c.l.b16 %v303
    %v320 = vpack.c.b16 %v313, %v312
    %v321 = vpack.c.b16 %v315, %v314
    %v322 = vpack.c.b16 %v317, %v316
    %v323 = vpack.c.b16 %v319, %v318
    %328 = vmatprep.subr.bf16.mxu0 0
    %329 = vmatpush1.bf16.msra.mxu0 %v320
    %330 = vmatprep.subr.bf16.mxu0 0
    %331 = vmatpush1.bf16.msra.mxu0 %v321
    %332 = vmatprep.subr.bf16.mxu0 0
    %333 = vmatpush1.bf16.msra.mxu0 %v322
    %334 = vmatprep.subr.bf16.mxu0 0
    %335 = vmatpush1.bf16.msra.mxu0 %v323
    %336 = vmatprep.subr.bf16.mxu0 0
    %337 = vmatpush1.bf16.msra.mxu0 0
    %338 = vmatprep.subr.bf16.mxu0 0
    %339 = vmatpush1.bf16.msra.mxu0 0
    %340 = vmatprep.subr.bf16.mxu0 0
    %341 = vmatpush1.bf16.msra.mxu0 0
    %342 = vmatprep.subr.bf16.mxu0 0
    %343 = vmatpush1.bf16.msra.mxu0 0
    %344 = vmatprep.subr.bf16.mxu0 0
    %345 = vmatpush1.bf16.msra.mxu0 0
    %346 = vmatprep.subr.bf16.mxu0 0
    %347 = vmatpush1.bf16.msra.mxu0 0
    %348 = vmatprep.subr.bf16.mxu0 0
    %349 = vmatpush1.bf16.msra.mxu0 0
    %350 = vmatprep.subr.bf16.mxu0 0
    %351 = vmatpush1.bf16.msra.mxu0 0
    %352 = vmatprep.subr.bf16.mxu0 0
    %353 = vmatpush1.bf16.msra.mxu0 0
    %354 = vmatprep.subr.bf16.mxu0 0
    %355 = vmatpush1.bf16.msra.mxu0 0
    %356 = vmatprep.subr.bf16.mxu0 0
    %357 = vmatpush1.bf16.msra.mxu0 0
    %358 = vmatprep.subr.bf16.mxu0 0
    %359 = vmatpush1.bf16.msra.mxu0 0
    %360 = vmatprep.mubr.bf16.mxu0 0
    %361 = vmatmul.mubr.bf16.gmra.mrb[0].mxu0 %v111
    %v362 = vpop.f32.mrb[0].mxu0
    %v363 = vadd.f32 0.0, %v362
    %v364 = vpop.f32.mrb[0].mxu0
    %v365 = vpop.f32.mrb[0].mxu0
    %v366 = vadd.f32 0.0, %v365
    %v367 = vpop.f32.mrb[0].mxu0
    %368 = vmatprep.mubr.bf16.mxu0 0
    %369 = vmatmul.mubr.bf16.gmra.mrb[0].mxu0 %v114
    %v370 = vpop.f32.mrb[0].mxu0
    %v371 = vadd.f32 0.0, %v370
    %v372 = vpop.f32.mrb[0].mxu0
    %v373 = vpop.f32.mrb[0].mxu0
    %v374 = vadd.f32 0.0, %v373
    %v375 = vpop.f32.mrb[0].mxu0
    %376 = vmatprep.mubr.bf16.mxu0 0
    %377 = vmatmul.mubr.bf16.gmra.mrb[0].mxu0 %v117
    %v378 = vpop.f32.mrb[0].mxu0
    %v379 = vadd.f32 0.0, %v378
    %v380 = vpop.f32.mrb[0].mxu0
    %v381 = vpop.f32.mrb[0].mxu0
    %v382 = vadd.f32 0.0, %v381
    %v383 = vpop.f32.mrb[0].mxu0
    %384 = vmatprep.mubr.bf16.mxu0 0
    %385 = vmatmul.mubr.bf16.gmra.mrb[0].mxu0 %v120
    %v386 = vpop.f32.mrb[0].mxu0
    %v387 = vadd.f32 0.0, %v386
    %v388 = vpop.f32.mrb[0].mxu0
    %v389 = vpop.f32.mrb[0].mxu0
    %v390 = vadd.f32 0.0, %v389
    %v391 = vpop.f32.mrb[0].mxu0
    %392 = vdwg.mxu0
    %v393 = vrot.slane %v363, 2
    %v394 = vrot.slane %v366, 2
    %v395 = vrot.slane %v371, 2
    %v396 = vrot.slane %v374, 2
    %v397 = vrot.slane %v379, 2
    %v398 = vrot.slane %v382, 2
    %v399 = vrot.slane %v387, 2
    %v400 = vrot.slane %v390, 2
    %vm401 = vcmp.lt.s32.totalorder %v196, 6
    %v402 = vsel %vm401, %v399, %v400
    %v403 = vsel %vm401, %v398, %v399
    %v404 = vsel %vm401, %v397, %v398
    %v405 = vsel %vm401, %v396, %v397
    %v406 = vsel %vm401, %v395, %v396
    %v407 = vsel %vm401, %v394, %v395
    %v408 = vsel %vm401, %v393, %v394
    %v409 = vsel %vm401, %v400, %v393
    %v410 = vadd.f32 %v265, %v408
    %v411 = vadd.f32 %v268, %v407
    %v412 = vadd.f32 %v273, %v406
    %v413 = vadd.f32 %v276, %v405
    %v414 = vadd.f32 %v281, %v404
    %v415 = vadd.f32 %v284, %v403
    %v416 = vadd.f32 %v289, %v402
    %v417 = vadd.f32 %v292, %v409
    %s418 = scalar_lea.vmem %s1, 96
    %v419 = vld [vmem:[%s418] sm:$0xf]
    %v420 = vld [vmem:[%s418 + $0x4] sm:$0xf]
    %v421 = vld [vmem:[%s418 + $0x8] sm:$0xf]
    %v422 = vld [vmem:[%s418 + $0xc] sm:$0xf]
    %v423 = vld [vmem:[%s418 + $0x10] sm:$0xf]
    %v424 = vld [vmem:[%s418 + $0x14] sm:$0xf]
    %v425 = vld [vmem:[%s418 + $0x18] sm:$0xf]
    %v426 = vld [vmem:[%s418 + $0x1c] sm:$0xf]
    %v435 = vunpack.c.l.b16 %v419
    %v436 = vunpack.c.l.b16 %v420
    %v437 = vunpack.c.l.b16 %v421
    %v438 = vunpack.c.l.b16 %v422
    %v439 = vunpack.c.l.b16 %v423
    %v440 = vunpack.c.l.b16 %v424
    %v441 = vunpack.c.l.b16 %v425
    %v442 = vunpack.c.l.b16 %v426
    %v443 = vpack.c.b16 %v436, %v435
    %v444 = vpack.c.b16 %v438, %v437
    %v445 = vpack.c.b16 %v440, %v439
    %v446 = vpack.c.b16 %v442, %v441
    %451 = vmatprep.subr.bf16.mxu0 0
    %452 = vmatpush1.bf16.msra.mxu0 %v443
    %453 = vmatprep.subr.bf16.mxu0 0
    %454 = vmatpush1.bf16.msra.mxu0 %v444
    %455 = vmatprep.subr.bf16.mxu0 0
    %456 = vmatpush1.bf16.msra.mxu0 %v445
    %457 = vmatprep.subr.bf16.mxu0 0
    %458 = vmatpush1.bf16.msra.mxu0 %v446
    %459 = vmatprep.subr.bf16.mxu0 0
    %460 = vmatpush1.bf16.msra.mxu0 0
    %461 = vmatprep.subr.bf16.mxu0 0
    %462 = vmatpush1.bf16.msra.mxu0 0
    %463 = vmatprep.subr.bf16.mxu0 0
    %464 = vmatpush1.bf16.msra.mxu0 0
    %465 = vmatprep.subr.bf16.mxu0 0
    %466 = vmatpush1.bf16.msra.mxu0 0
    %467 = vmatprep.subr.bf16.mxu0 0
    %468 = vmatpush1.bf16.msra.mxu0 0
    %469 = vmatprep.subr.bf16.mxu0 0
    %470 = vmatpush1.bf16.msra.mxu0 0
    %471 = vmatprep.subr.bf16.mxu0 0
    %472 = vmatpush1.bf16.msra.mxu0 0
    %473 = vmatprep.subr.bf16.mxu0 0
    %474 = vmatpush1.bf16.msra.mxu0 0
    %475 = vmatprep.subr.bf16.mxu0 0
    %476 = vmatpush1.bf16.msra.mxu0 0
    %477 = vmatprep.subr.bf16.mxu0 0
    %478 = vmatpush1.bf16.msra.mxu0 0
    %479 = vmatprep.subr.bf16.mxu0 0
    %480 = vmatpush1.bf16.msra.mxu0 0
    %481 = vmatprep.subr.bf16.mxu0 0
    %482 = vmatpush1.bf16.msra.mxu0 0
    %483 = vmatprep.mubr.bf16.mxu0 0
    %484 = vmatmul.mubr.bf16.gmra.mrb[0].mxu0 %v111
    %v485 = vpop.f32.mrb[0].mxu0
    %v486 = vadd.f32 0.0, %v485
    %v487 = vpop.f32.mrb[0].mxu0
    %v488 = vpop.f32.mrb[0].mxu0
    %v489 = vadd.f32 0.0, %v488
    %v490 = vpop.f32.mrb[0].mxu0
    %491 = vmatprep.mubr.bf16.mxu0 0
    %492 = vmatmul.mubr.bf16.gmra.mrb[0].mxu0 %v114
    %v493 = vpop.f32.mrb[0].mxu0
    %v494 = vadd.f32 0.0, %v493
    %v495 = vpop.f32.mrb[0].mxu0
    %v496 = vpop.f32.mrb[0].mxu0
    %v497 = vadd.f32 0.0, %v496
    %v498 = vpop.f32.mrb[0].mxu0
    %499 = vmatprep.mubr.bf16.mxu0 0
    %500 = vmatmul.mubr.bf16.gmra.mrb[0].mxu0 %v117
    %v501 = vpop.f32.mrb[0].mxu0
    %v502 = vadd.f32 0.0, %v501
    %v503 = vpop.f32.mrb[0].mxu0
    %v504 = vpop.f32.mrb[0].mxu0
    %v505 = vadd.f32 0.0, %v504
    %v506 = vpop.f32.mrb[0].mxu0
    %507 = vmatprep.mubr.bf16.mxu0 0
    %508 = vmatmul.mubr.bf16.gmra.mrb[0].mxu0 %v120
    %v509 = vpop.f32.mrb[0].mxu0
    %v510 = vadd.f32 0.0, %v509
    %v511 = vpop.f32.mrb[0].mxu0
    %v512 = vpop.f32.mrb[0].mxu0
    %v513 = vadd.f32 0.0, %v512
    %v514 = vpop.f32.mrb[0].mxu0
    %515 = vdwg.mxu0
    %v516 = vrot.slane %v486, 3
    %v517 = vrot.slane %v489, 3
    %v518 = vrot.slane %v494, 3
    %v519 = vrot.slane %v497, 3
    %v520 = vrot.slane %v502, 3
    %v521 = vrot.slane %v505, 3
    %v522 = vrot.slane %v510, 3
    %v523 = vrot.slane %v513, 3
    %vm524 = vcmp.lt.s32.totalorder %v196, 5
    %v525 = vsel %vm524, %v522, %v523
    %v526 = vsel %vm524, %v521, %v522
    %v527 = vsel %vm524, %v520, %v521
    %v528 = vsel %vm524, %v519, %v520
    %v529 = vsel %vm524, %v518, %v519
    %v530 = vsel %vm524, %v517, %v518
    %v531 = vsel %vm524, %v516, %v517
    %v532 = vsel %vm524, %v523, %v516
    %v533 = vadd.f32 %v410, %v531
    %v534 = vadd.f32 %v411, %v530
    %v535 = vadd.f32 %v412, %v529
    %v536 = vadd.f32 %v413, %v528
    %v537 = vadd.f32 %v414, %v527
    %v538 = vadd.f32 %v415, %v526
    %v539 = vadd.f32 %v416, %v525
    %v540 = vadd.f32 %v417, %v532
    %s541 = scalar_lea.vmem %s1, 128
    %v542 = vld [vmem:[%s541] sm:$0xf]
    %v543 = vld [vmem:[%s541 + $0x4] sm:$0xf]
    %v544 = vld [vmem:[%s541 + $0x8] sm:$0xf]
    %v545 = vld [vmem:[%s541 + $0xc] sm:$0xf]
    %v546 = vld [vmem:[%s541 + $0x10] sm:$0xf]
    %v547 = vld [vmem:[%s541 + $0x14] sm:$0xf]
    %v548 = vld [vmem:[%s541 + $0x18] sm:$0xf]
    %v549 = vld [vmem:[%s541 + $0x1c] sm:$0xf]
    %v558 = vunpack.c.l.b16 %v542
    %v559 = vunpack.c.l.b16 %v543
    %v560 = vunpack.c.l.b16 %v544
    %v561 = vunpack.c.l.b16 %v545
    %v562 = vunpack.c.l.b16 %v546
    %v563 = vunpack.c.l.b16 %v547
    %v564 = vunpack.c.l.b16 %v548
    %v565 = vunpack.c.l.b16 %v549
    %v566 = vpack.c.b16 %v559, %v558
    %v567 = vpack.c.b16 %v561, %v560
    %v568 = vpack.c.b16 %v563, %v562
    %v569 = vpack.c.b16 %v565, %v564
    %574 = vmatprep.subr.bf16.mxu0 0
    %575 = vmatpush1.bf16.msra.mxu0 %v566
    %576 = vmatprep.subr.bf16.mxu0 0
    %577 = vmatpush1.bf16.msra.mxu0 %v567
    %578 = vmatprep.subr.bf16.mxu0 0
    %579 = vmatpush1.bf16.msra.mxu0 %v568
    %580 = vmatprep.subr.bf16.mxu0 0
    %581 = vmatpush1.bf16.msra.mxu0 %v569
    %582 = vmatprep.subr.bf16.mxu0 0
    %583 = vmatpush1.bf16.msra.mxu0 0
    %584 = vmatprep.subr.bf16.mxu0 0
    %585 = vmatpush1.bf16.msra.mxu0 0
    %586 = vmatprep.subr.bf16.mxu0 0
    %587 = vmatpush1.bf16.msra.mxu0 0
    %588 = vmatprep.subr.bf16.mxu0 0
    %589 = vmatpush1.bf16.msra.mxu0 0
    %590 = vmatprep.subr.bf16.mxu0 0
    %591 = vmatpush1.bf16.msra.mxu0 0
    %592 = vmatprep.subr.bf16.mxu0 0
    %593 = vmatpush1.bf16.msra.mxu0 0
    %594 = vmatprep.subr.bf16.mxu0 0
    %595 = vmatpush1.bf16.msra.mxu0 0
    %596 = vmatprep.subr.bf16.mxu0 0
    %597 = vmatpush1.bf16.msra.mxu0 0
    %598 = vmatprep.subr.bf16.mxu0 0
    %599 = vmatpush1.bf16.msra.mxu0 0
    %600 = vmatprep.subr.bf16.mxu0 0
    %601 = vmatpush1.bf16.msra.mxu0 0
    %602 = vmatprep.subr.bf16.mxu0 0
    %603 = vmatpush1.bf16.msra.mxu0 0
    %604 = vmatprep.subr.bf16.mxu0 0
    %605 = vmatpush1.bf16.msra.mxu0 0
    %606 = vmatprep.mubr.bf16.mxu0 0
    %607 = vmatmul.mubr.bf16.gmra.mrb[0].mxu0 %v111
    %v608 = vpop.f32.mrb[0].mxu0
    %v609 = vadd.f32 0.0, %v608
    %v610 = vpop.f32.mrb[0].mxu0
    %v611 = vpop.f32.mrb[0].mxu0
    %v612 = vadd.f32 0.0, %v611
    %v613 = vpop.f32.mrb[0].mxu0
    %614 = vmatprep.mubr.bf16.mxu0 0
    %615 = vmatmul.mubr.bf16.gmra.mrb[0].mxu0 %v114
    %v616 = vpop.f32.mrb[0].mxu0
    %v617 = vadd.f32 0.0, %v616
    %v618 = vpop.f32.mrb[0].mxu0
    %v619 = vpop.f32.mrb[0].mxu0
    %v620 = vadd.f32 0.0, %v619
    %v621 = vpop.f32.mrb[0].mxu0
    %622 = vmatprep.mubr.bf16.mxu0 0
    %623 = vmatmul.mubr.bf16.gmra.mrb[0].mxu0 %v117
    %v624 = vpop.f32.mrb[0].mxu0
    %v625 = vadd.f32 0.0, %v624
    %v626 = vpop.f32.mrb[0].mxu0
    %v627 = vpop.f32.mrb[0].mxu0
    %v628 = vadd.f32 0.0, %v627
    %v629 = vpop.f32.mrb[0].mxu0
    %630 = vmatprep.mubr.bf16.mxu0 0
    %631 = vmatmul.mubr.bf16.gmra.mrb[0].mxu0 %v120
    %v632 = vpop.f32.mrb[0].mxu0
    %v633 = vadd.f32 0.0, %v632
    %v634 = vpop.f32.mrb[0].mxu0
    %v635 = vpop.f32.mrb[0].mxu0
    %v636 = vadd.f32 0.0, %v635
    %v637 = vpop.f32.mrb[0].mxu0
    %638 = vdwg.mxu0
    %v639 = vrot.slane %v609, 4
    %v640 = vrot.slane %v612, 4
    %v641 = vrot.slane %v617, 4
    %v642 = vrot.slane %v620, 4
    %v643 = vrot.slane %v625, 4
    %v644 = vrot.slane %v628, 4
    %v645 = vrot.slane %v633, 4
    %v646 = vrot.slane %v636, 4
    %vm647 = vcmp.lt.s32.totalorder %v196, 4
    %v648 = vsel %vm647, %v645, %v646
    %v649 = vsel %vm647, %v644, %v645
    %v650 = vsel %vm647, %v643, %v644
    %v651 = vsel %vm647, %v642, %v643
    %v652 = vsel %vm647, %v641, %v642
    %v653 = vsel %vm647, %v640, %v641
    %v654 = vsel %vm647, %v639, %v640
    %v655 = vsel %vm647, %v646, %v639
    %v656 = vadd.f32 %v533, %v654
    %v657 = vadd.f32 %v534, %v653
    %v658 = vadd.f32 %v535, %v652
    %v659 = vadd.f32 %v536, %v651
    %v660 = vadd.f32 %v537, %v650
    %v661 = vadd.f32 %v538, %v649
    %v662 = vadd.f32 %v539, %v648
    %v663 = vadd.f32 %v540, %v655
    %v664 = vld [vmem:[%s2] sm:$0x1]
    %v666 = vlaneseq
    %v667 = vshrl.u32 %v666, 7
    %v668 = vsub.s32 0, %v667
    %v669 = vrot.slane %v664, %v668
    %v671 = vadd.f32 %v656, %v669
    %v672 = vadd.f32 %v657, %v669
    %v673 = vadd.f32 %v658, %v669
    %v674 = vadd.f32 %v659, %v669
    %v675 = vadd.f32 %v660, %v669
    %v676 = vadd.f32 %v661, %v669
    %v677 = vadd.f32 %v662, %v669
    %v678 = vadd.f32 %v663, %v669
    %v679 = vmax.f32 %v671, 0.0
    %v680 = vmax.f32 %v672, 0.0
    %v681 = vmax.f32 %v673, 0.0
    %v682 = vmax.f32 %v674, 0.0
    %v683 = vmax.f32 %v675, 0.0
    %v684 = vmax.f32 %v676, 0.0
    %v685 = vmax.f32 %v677, 0.0
    %v686 = vmax.f32 %v678, 0.0
    %v687 = vpack.c.bf16 %v680, %v679
    %v688 = vpack.c.bf16 %v682, %v681
    %v689 = vpack.c.bf16 %v684, %v683
    %v690 = vpack.c.bf16 %v686, %v685
    %v691 = vld [vmem:[%s3] sm:$0xf]
    %v692 = vld [vmem:[%s3 + $0x4] sm:$0xf]
    %v693 = vld [vmem:[%s3 + $0x8] sm:$0xf]
    %v694 = vld [vmem:[%s3 + $0xc] sm:$0xf]
    %v695 = vld [vmem:[%s3 + $0x10] sm:$0xf]
    %v696 = vld [vmem:[%s3 + $0x14] sm:$0xf]
    %v697 = vld [vmem:[%s3 + $0x18] sm:$0xf]
    %v698 = vld [vmem:[%s3 + $0x1c] sm:$0xf]
    %v699 = vld [vmem:[%s3 + $0x20] sm:$0xf]
    %v700 = vld [vmem:[%s3 + $0x24] sm:$0xf]
    %v701 = vld [vmem:[%s3 + $0x28] sm:$0xf]
    %v702 = vld [vmem:[%s3 + $0x2c] sm:$0xf]
    %v703 = vld [vmem:[%s3 + $0x30] sm:$0xf]
    %v704 = vld [vmem:[%s3 + $0x34] sm:$0xf]
    %v705 = vld [vmem:[%s3 + $0x38] sm:$0xf]
    %v706 = vld [vmem:[%s3 + $0x3c] sm:$0xf]
    %s707 = scalar_lea.vmem %s3, 64
    %v708 = vld [vmem:[%s707] sm:$0xf]
    %v709 = vld [vmem:[%s707 + $0x4] sm:$0xf]
    %v710 = vld [vmem:[%s707 + $0x8] sm:$0xf]
    %v711 = vld [vmem:[%s707 + $0xc] sm:$0xf]
    %v712 = vld [vmem:[%s707 + $0x10] sm:$0xf]
    %v713 = vld [vmem:[%s707 + $0x14] sm:$0xf]
    %v714 = vld [vmem:[%s707 + $0x18] sm:$0xf]
    %v715 = vld [vmem:[%s707 + $0x1c] sm:$0xf]
    %v716 = vld [vmem:[%s707 + $0x20] sm:$0xf]
    %v717 = vld [vmem:[%s707 + $0x24] sm:$0xf]
    %v718 = vld [vmem:[%s707 + $0x28] sm:$0xf]
    %v719 = vld [vmem:[%s707 + $0x2c] sm:$0xf]
    %v720 = vld [vmem:[%s707 + $0x30] sm:$0xf]
    %v721 = vld [vmem:[%s707 + $0x34] sm:$0xf]
    %v722 = vld [vmem:[%s707 + $0x38] sm:$0xf]
    %v723 = vld [vmem:[%s707 + $0x3c] sm:$0xf]
    %v740 = vunpack.c.l.b16 %v708
    %v741 = vunpack.c.l.b16 %v709
    %v742 = vunpack.c.l.b16 %v710
    %v743 = vunpack.c.l.b16 %v711
    %v744 = vunpack.c.l.b16 %v712
    %v745 = vunpack.c.l.b16 %v713
    %v746 = vunpack.c.l.b16 %v714
    %v747 = vunpack.c.l.b16 %v715
    %v748 = vunpack.c.l.b16 %v716
    %v749 = vunpack.c.l.b16 %v717
    %v750 = vunpack.c.l.b16 %v718
    %v751 = vunpack.c.l.b16 %v719
    %v752 = vunpack.c.l.b16 %v720
    %v753 = vunpack.c.l.b16 %v721
    %v754 = vunpack.c.l.b16 %v722
    %v755 = vunpack.c.l.b16 %v723
    %v756 = vpack.c.b16 %v741, %v740
    %v757 = vpack.c.b16 %v743, %v742
    %v758 = vpack.c.b16 %v745, %v744
    %v759 = vpack.c.b16 %v747, %v746
    %v760 = vpack.c.b16 %v749, %v748
    %v761 = vpack.c.b16 %v751, %v750
    %v762 = vpack.c.b16 %v753, %v752
    %v763 = vpack.c.b16 %v755, %v754
    %772 = vmatprep.subr.bf16.mxu0 0
    %773 = vmatpush1.bf16.msra.mxu0 %v756
    %774 = vmatprep.subr.bf16.mxu0 0
    %775 = vmatpush1.bf16.msra.mxu0 %v757
    %776 = vmatprep.subr.bf16.mxu0 0
    %777 = vmatpush1.bf16.msra.mxu0 %v758
    %778 = vmatprep.subr.bf16.mxu0 0
    %779 = vmatpush1.bf16.msra.mxu0 %v759
    %780 = vmatprep.subr.bf16.mxu0 0
    %781 = vmatpush1.bf16.msra.mxu0 %v760
    %782 = vmatprep.subr.bf16.mxu0 0
    %783 = vmatpush1.bf16.msra.mxu0 %v761
    %784 = vmatprep.subr.bf16.mxu0 0
    %785 = vmatpush1.bf16.msra.mxu0 %v762
    %786 = vmatprep.subr.bf16.mxu0 0
    %787 = vmatpush1.bf16.msra.mxu0 %v763
    %788 = vmatprep.subr.bf16.mxu0 0
    %789 = vmatpush1.bf16.msra.mxu0 0
    %790 = vmatprep.subr.bf16.mxu0 0
    %791 = vmatpush1.bf16.msra.mxu0 0
    %792 = vmatprep.subr.bf16.mxu0 0
    %793 = vmatpush1.bf16.msra.mxu0 0
    %794 = vmatprep.subr.bf16.mxu0 0
    %795 = vmatpush1.bf16.msra.mxu0 0
    %796 = vmatprep.subr.bf16.mxu0 0
    %797 = vmatpush1.bf16.msra.mxu0 0
    %798 = vmatprep.subr.bf16.mxu0 0
    %799 = vmatpush1.bf16.msra.mxu0 0
    %800 = vmatprep.subr.bf16.mxu0 0
    %801 = vmatpush1.bf16.msra.mxu0 0
    %802 = vmatprep.subr.bf16.mxu0 0
    %803 = vmatpush1.bf16.msra.mxu0 0
    %804 = vmatprep.mubr.bf16.mxu0 0
    %805 = vmatmul.mubr.bf16.gmra.mrb[0].mxu0 %v687
    %v806 = vpop.f32.mrb[0].mxu0
    %v807 = vadd.f32 0.0, %v806
    %v808 = vpop.f32.mrb[0].mxu0
    %v809 = vpop.f32.mrb[0].mxu0
    %v810 = vadd.f32 0.0, %v809
    %v811 = vpop.f32.mrb[0].mxu0
    %812 = vmatprep.mubr.bf16.mxu0 0
    %813 = vmatmul.mubr.bf16.gmra.mrb[0].mxu0 %v688
    %v814 = vpop.f32.mrb[0].mxu0
    %v815 = vadd.f32 0.0, %v814
    %v816 = vpop.f32.mrb[0].mxu0
    %v817 = vpop.f32.mrb[0].mxu0
    %v818 = vadd.f32 0.0, %v817
    %v819 = vpop.f32.mrb[0].mxu0
    %820 = vmatprep.mubr.bf16.mxu0 0
    %821 = vmatmul.mubr.bf16.gmra.mrb[0].mxu0 %v689
    %v822 = vpop.f32.mrb[0].mxu0
    %v823 = vadd.f32 0.0, %v822
    %v824 = vpop.f32.mrb[0].mxu0
    %v825 = vpop.f32.mrb[0].mxu0
    %v826 = vadd.f32 0.0, %v825
    %v827 = vpop.f32.mrb[0].mxu0
    %828 = vmatprep.mubr.bf16.mxu0 0
    %829 = vmatmul.mubr.bf16.gmra.mrb[0].mxu0 %v690
    %v830 = vpop.f32.mrb[0].mxu0
    %v831 = vadd.f32 0.0, %v830
    %v832 = vpop.f32.mrb[0].mxu0
    %v833 = vpop.f32.mrb[0].mxu0
    %v834 = vadd.f32 0.0, %v833
    %v835 = vpop.f32.mrb[0].mxu0
    %836 = vdwg.mxu0
    %v837 = vrot.slane %v807, 1
    %v838 = vrot.slane %v810, 1
    %v839 = vrot.slane %v815, 1
    %v840 = vrot.slane %v818, 1
    %v841 = vrot.slane %v823, 1
    %v842 = vrot.slane %v826, 1
    %v843 = vrot.slane %v831, 1
    %v844 = vrot.slane %v834, 1
    %v845 = vsel %vm197, %v843, %v844
    %v846 = vsel %vm197, %v842, %v843
    %v847 = vsel %vm197, %v841, %v842
    %v848 = vsel %vm197, %v840, %v841
    %v849 = vsel %vm197, %v839, %v840
    %v850 = vsel %vm197, %v838, %v839
    %v851 = vsel %vm197, %v837, %v838
    %v852 = vsel %vm197, %v844, %v837
    %v869 = vunpack.c.l.b16 %v691
    %v870 = vunpack.c.l.b16 %v692
    %v871 = vunpack.c.l.b16 %v693
    %v872 = vunpack.c.l.b16 %v694
    %v873 = vunpack.c.l.b16 %v695
    %v874 = vunpack.c.l.b16 %v696
    %v875 = vunpack.c.l.b16 %v697
    %v876 = vunpack.c.l.b16 %v698
    %v877 = vunpack.c.l.b16 %v699
    %v878 = vunpack.c.l.b16 %v700
    %v879 = vunpack.c.l.b16 %v701
    %v880 = vunpack.c.l.b16 %v702
    %v881 = vunpack.c.l.b16 %v703
    %v882 = vunpack.c.l.b16 %v704
    %v883 = vunpack.c.l.b16 %v705
    %v884 = vunpack.c.l.b16 %v706
    %v885 = vpack.c.b16 %v870, %v869
    %v886 = vpack.c.b16 %v872, %v871
    %v887 = vpack.c.b16 %v874, %v873
    %v888 = vpack.c.b16 %v876, %v875
    %v889 = vpack.c.b16 %v878, %v877
    %v890 = vpack.c.b16 %v880, %v879
    %v891 = vpack.c.b16 %v882, %v881
    %v892 = vpack.c.b16 %v884, %v883
    %901 = vmatprep.subr.bf16.mxu0 0
    %902 = vmatpush1.bf16.msra.mxu0 %v885
    %903 = vmatprep.subr.bf16.mxu0 0
    %904 = vmatpush1.bf16.msra.mxu0 %v886
    %905 = vmatprep.subr.bf16.mxu0 0
    %906 = vmatpush1.bf16.msra.mxu0 %v887
    %907 = vmatprep.subr.bf16.mxu0 0
    %908 = vmatpush1.bf16.msra.mxu0 %v888
    %909 = vmatprep.subr.bf16.mxu0 0
    %910 = vmatpush1.bf16.msra.mxu0 %v889
    %911 = vmatprep.subr.bf16.mxu0 0
    %912 = vmatpush1.bf16.msra.mxu0 %v890
    %913 = vmatprep.subr.bf16.mxu0 0
    %914 = vmatpush1.bf16.msra.mxu0 %v891
    %915 = vmatprep.subr.bf16.mxu0 0
    %916 = vmatpush1.bf16.msra.mxu0 %v892
    %917 = vmatprep.subr.bf16.mxu0 0
    %918 = vmatpush1.bf16.msra.mxu0 0
    %919 = vmatprep.subr.bf16.mxu0 0
    %920 = vmatpush1.bf16.msra.mxu0 0
    %921 = vmatprep.subr.bf16.mxu0 0
    %922 = vmatpush1.bf16.msra.mxu0 0
    %923 = vmatprep.subr.bf16.mxu0 0
    %924 = vmatpush1.bf16.msra.mxu0 0
    %925 = vmatprep.subr.bf16.mxu0 0
    %926 = vmatpush1.bf16.msra.mxu0 0
    %927 = vmatprep.subr.bf16.mxu0 0
    %928 = vmatpush1.bf16.msra.mxu0 0
    %929 = vmatprep.subr.bf16.mxu0 0
    %930 = vmatpush1.bf16.msra.mxu0 0
    %931 = vmatprep.subr.bf16.mxu0 0
    %932 = vmatpush1.bf16.msra.mxu0 0
    %933 = vmatprep.mubr.bf16.mxu0 0
    %934 = vmatmul.mubr.bf16.gmra.mrb[0].mxu0 %v687
    %v935 = vpop.f32.mrb[0].mxu0
    %v936 = vadd.f32 %v851, %v935
    %v937 = vpop.f32.mrb[0].mxu0
    %v938 = vpop.f32.mrb[0].mxu0
    %v939 = vadd.f32 %v850, %v938
    %v940 = vpop.f32.mrb[0].mxu0
    %941 = vmatprep.mubr.bf16.mxu0 0
    %942 = vmatmul.mubr.bf16.gmra.mrb[0].mxu0 %v688
    %v943 = vpop.f32.mrb[0].mxu0
    %v944 = vadd.f32 %v849, %v943
    %v945 = vpop.f32.mrb[0].mxu0
    %v946 = vpop.f32.mrb[0].mxu0
    %v947 = vadd.f32 %v848, %v946
    %v948 = vpop.f32.mrb[0].mxu0
    %949 = vmatprep.mubr.bf16.mxu0 0
    %950 = vmatmul.mubr.bf16.gmra.mrb[0].mxu0 %v689
    %v951 = vpop.f32.mrb[0].mxu0
    %v952 = vadd.f32 %v847, %v951
    %v953 = vpop.f32.mrb[0].mxu0
    %v954 = vpop.f32.mrb[0].mxu0
    %v955 = vadd.f32 %v846, %v954
    %v956 = vpop.f32.mrb[0].mxu0
    %957 = vmatprep.mubr.bf16.mxu0 0
    %958 = vmatmul.mubr.bf16.gmra.mrb[0].mxu0 %v690
    %v959 = vpop.f32.mrb[0].mxu0
    %v960 = vadd.f32 %v845, %v959
    %v961 = vpop.f32.mrb[0].mxu0
    %v962 = vpop.f32.mrb[0].mxu0
    %v963 = vadd.f32 %v852, %v962
    %v964 = vpop.f32.mrb[0].mxu0
    %965 = vdwg.mxu0
    %s966 = scalar_lea.vmem %s3, 128
    %v967 = vld [vmem:[%s966] sm:$0xf]
    %v968 = vld [vmem:[%s966 + $0x4] sm:$0xf]
    %v969 = vld [vmem:[%s966 + $0x8] sm:$0xf]
    %v970 = vld [vmem:[%s966 + $0xc] sm:$0xf]
    %v971 = vld [vmem:[%s966 + $0x10] sm:$0xf]
    %v972 = vld [vmem:[%s966 + $0x14] sm:$0xf]
    %v973 = vld [vmem:[%s966 + $0x18] sm:$0xf]
    %v974 = vld [vmem:[%s966 + $0x1c] sm:$0xf]
    %v975 = vld [vmem:[%s966 + $0x20] sm:$0xf]
    %v976 = vld [vmem:[%s966 + $0x24] sm:$0xf]
    %v977 = vld [vmem:[%s966 + $0x28] sm:$0xf]
    %v978 = vld [vmem:[%s966 + $0x2c] sm:$0xf]
    %v979 = vld [vmem:[%s966 + $0x30] sm:$0xf]
    %v980 = vld [vmem:[%s966 + $0x34] sm:$0xf]
    %v981 = vld [vmem:[%s966 + $0x38] sm:$0xf]
    %v982 = vld [vmem:[%s966 + $0x3c] sm:$0xf]
    %v999 = vunpack.c.l.b16 %v967
    %v1000 = vunpack.c.l.b16 %v968
    %v1001 = vunpack.c.l.b16 %v969
    %v1002 = vunpack.c.l.b16 %v970
    %v1003 = vunpack.c.l.b16 %v971
    %v1004 = vunpack.c.l.b16 %v972
    %v1005 = vunpack.c.l.b16 %v973
    %v1006 = vunpack.c.l.b16 %v974
    %v1007 = vunpack.c.l.b16 %v975
    %v1008 = vunpack.c.l.b16 %v976
    %v1009 = vunpack.c.l.b16 %v977
    %v1010 = vunpack.c.l.b16 %v978
    %v1011 = vunpack.c.l.b16 %v979
    %v1012 = vunpack.c.l.b16 %v980
    %v1013 = vunpack.c.l.b16 %v981
    %v1014 = vunpack.c.l.b16 %v982
    %v1015 = vpack.c.b16 %v1000, %v999
    %v1016 = vpack.c.b16 %v1002, %v1001
    %v1017 = vpack.c.b16 %v1004, %v1003
    %v1018 = vpack.c.b16 %v1006, %v1005
    %v1019 = vpack.c.b16 %v1008, %v1007
    %v1020 = vpack.c.b16 %v1010, %v1009
    %v1021 = vpack.c.b16 %v1012, %v1011
    %v1022 = vpack.c.b16 %v1014, %v1013
    %1031 = vmatprep.subr.bf16.mxu0 0
    %1032 = vmatpush1.bf16.msra.mxu0 %v1015
    %1033 = vmatprep.subr.bf16.mxu0 0
    %1034 = vmatpush1.bf16.msra.mxu0 %v1016
    %1035 = vmatprep.subr.bf16.mxu0 0
    %1036 = vmatpush1.bf16.msra.mxu0 %v1017
    %1037 = vmatprep.subr.bf16.mxu0 0
    %1038 = vmatpush1.bf16.msra.mxu0 %v1018
    %1039 = vmatprep.subr.bf16.mxu0 0
    %1040 = vmatpush1.bf16.msra.mxu0 %v1019
    %1041 = vmatprep.subr.bf16.mxu0 0
    %1042 = vmatpush1.bf16.msra.mxu0 %v1020
    %1043 = vmatprep.subr.bf16.mxu0 0
    %1044 = vmatpush1.bf16.msra.mxu0 %v1021
    %1045 = vmatprep.subr.bf16.mxu0 0
    %1046 = vmatpush1.bf16.msra.mxu0 %v1022
    %1047 = vmatprep.subr.bf16.mxu0 0
    %1048 = vmatpush1.bf16.msra.mxu0 0
    %1049 = vmatprep.subr.bf16.mxu0 0
    %1050 = vmatpush1.bf16.msra.mxu0 0
    %1051 = vmatprep.subr.bf16.mxu0 0
    %1052 = vmatpush1.bf16.msra.mxu0 0
    %1053 = vmatprep.subr.bf16.mxu0 0
    %1054 = vmatpush1.bf16.msra.mxu0 0
    %1055 = vmatprep.subr.bf16.mxu0 0
    %1056 = vmatpush1.bf16.msra.mxu0 0
    %1057 = vmatprep.subr.bf16.mxu0 0
    %1058 = vmatpush1.bf16.msra.mxu0 0
    %1059 = vmatprep.subr.bf16.mxu0 0
    %1060 = vmatpush1.bf16.msra.mxu0 0
    %1061 = vmatprep.subr.bf16.mxu0 0
    %1062 = vmatpush1.bf16.msra.mxu0 0
    %1063 = vmatprep.mubr.bf16.mxu0 0
    %1064 = vmatmul.mubr.bf16.gmra.mrb[0].mxu0 %v687
    %v1065 = vpop.f32.mrb[0].mxu0
    %v1066 = vadd.f32 0.0, %v1065
    %v1067 = vpop.f32.mrb[0].mxu0
    %v1068 = vpop.f32.mrb[0].mxu0
    %v1069 = vadd.f32 0.0, %v1068
    %v1070 = vpop.f32.mrb[0].mxu0
    %1071 = vmatprep.mubr.bf16.mxu0 0
    %1072 = vmatmul.mubr.bf16.gmra.mrb[0].mxu0 %v688
    %v1073 = vpop.f32.mrb[0].mxu0
    %v1074 = vadd.f32 0.0, %v1073
    %v1075 = vpop.f32.mrb[0].mxu0
    %v1076 = vpop.f32.mrb[0].mxu0
    %v1077 = vadd.f32 0.0, %v1076
    %v1078 = vpop.f32.mrb[0].mxu0
    %1079 = vmatprep.mubr.bf16.mxu0 0
    %1080 = vmatmul.mubr.bf16.gmra.mrb[0].mxu0 %v689
    %v1081 = vpop.f32.mrb[0].mxu0
    %v1082 = vadd.f32 0.0, %v1081
    %v1083 = vpop.f32.mrb[0].mxu0
    %v1084 = vpop.f32.mrb[0].mxu0
    %v1085 = vadd.f32 0.0, %v1084
    %v1086 = vpop.f32.mrb[0].mxu0
    %1087 = vmatprep.mubr.bf16.mxu0 0
    %1088 = vmatmul.mubr.bf16.gmra.mrb[0].mxu0 %v690
    %v1089 = vpop.f32.mrb[0].mxu0
    %v1090 = vadd.f32 0.0, %v1089
    %v1091 = vpop.f32.mrb[0].mxu0
    %v1092 = vpop.f32.mrb[0].mxu0
    %v1093 = vadd.f32 0.0, %v1092
    %v1094 = vpop.f32.mrb[0].mxu0
    %1095 = vdwg.mxu0
    %v1096 = vrot.slane %v1066, 2
    %v1097 = vrot.slane %v1069, 2
    %v1098 = vrot.slane %v1074, 2
    %v1099 = vrot.slane %v1077, 2
    %v1100 = vrot.slane %v1082, 2
    %v1101 = vrot.slane %v1085, 2
    %v1102 = vrot.slane %v1090, 2
    %v1103 = vrot.slane %v1093, 2
    %v1104 = vsel %vm401, %v1102, %v1103
    %v1105 = vsel %vm401, %v1101, %v1102
    %v1106 = vsel %vm401, %v1100, %v1101
    %v1107 = vsel %vm401, %v1099, %v1100
    %v1108 = vsel %vm401, %v1098, %v1099
    %v1109 = vsel %vm401, %v1097, %v1098
    %v1110 = vsel %vm401, %v1096, %v1097
    %v1111 = vsel %vm401, %v1103, %v1096
    %v1112 = vadd.f32 %v936, %v1110
    %v1113 = vadd.f32 %v939, %v1109
    %v1114 = vadd.f32 %v944, %v1108
    %v1115 = vadd.f32 %v947, %v1107
    %v1116 = vadd.f32 %v952, %v1106
    %v1117 = vadd.f32 %v955, %v1105
    %v1118 = vadd.f32 %v960, %v1104
    %v1119 = vadd.f32 %v963, %v1111
    %v1120 = vld [vmem:[%s4] sm:$0x1]
    %v1122 = vlaneseq
    %v1123 = vshrl.u32 %v1122, 7
    %v1124 = vsub.s32 0, %v1123
    %v1125 = vrot.slane %v1120, %v1124
    %v1127 = vadd.f32 %v1112, %v1125
    %v1128 = vadd.f32 %v1113, %v1125
    %v1129 = vadd.f32 %v1114, %v1125
    %v1130 = vadd.f32 %v1115, %v1125
    %v1131 = vadd.f32 %v1116, %v1125
    %v1132 = vadd.f32 %v1117, %v1125
    %v1133 = vadd.f32 %v1118, %v1125
    %v1134 = vadd.f32 %v1119, %v1125
    %v1135 = vmax.f32 %v1127, 0.0
    %v1136 = vmax.f32 %v1128, 0.0
    %v1137 = vmax.f32 %v1129, 0.0
    %v1138 = vmax.f32 %v1130, 0.0
    %v1139 = vmax.f32 %v1131, 0.0
    %v1140 = vmax.f32 %v1132, 0.0
    %v1141 = vmax.f32 %v1133, 0.0
    %v1142 = vmax.f32 %v1134, 0.0
    %v1143 = vadd.s32 %v196, 8
    %v1144 = vadd.s32 %v196, 16
    %v1145 = vadd.s32 %v196, 24
    %v1146 = vadd.s32 %v196, 32
    %v1147 = vadd.s32 %v196, 40
    %v1148 = vadd.s32 %v196, 48
    %v1149 = vadd.s32 %v196, 56
    %vm1150 = vcmp.lt.s32.totalorder %v196, 0
    %v1151 = vsub.s32 0, %v196
    %v1152 = vsel %vm1150, %v1151, %v196
    %v1153 = vshrl.u32 %v1152, 4
    %v1154 = vand.u32 %v1152, 15
    %v1155 = vsub.s32 0, %v1154
    %v1156 = vsel %vm1150, %v1155, %v1154
    %vm1157 = vcmp.lt.s32.totalorder %v1143, 0
    %v1158 = vsub.s32 0, %v1143
    %v1159 = vsel %vm1157, %v1158, %v1143
    %v1160 = vshrl.u32 %v1159, 4
    %v1161 = vand.u32 %v1159, 15
    %v1162 = vsub.s32 0, %v1161
    %v1163 = vsel %vm1157, %v1162, %v1161
    %vm1164 = vcmp.lt.s32.totalorder %v1144, 0
    %v1165 = vsub.s32 0, %v1144
    %v1166 = vsel %vm1164, %v1165, %v1144
    %v1167 = vshrl.u32 %v1166, 4
    %v1168 = vand.u32 %v1166, 15
    %v1169 = vsub.s32 0, %v1168
    %v1170 = vsel %vm1164, %v1169, %v1168
    %vm1171 = vcmp.lt.s32.totalorder %v1145, 0
    %v1172 = vsub.s32 0, %v1145
    %v1173 = vsel %vm1171, %v1172, %v1145
    %v1174 = vshrl.u32 %v1173, 4
    %v1175 = vand.u32 %v1173, 15
    %v1176 = vsub.s32 0, %v1175
    %v1177 = vsel %vm1171, %v1176, %v1175
    %vm1178 = vcmp.lt.s32.totalorder %v1146, 0
    %v1179 = vsub.s32 0, %v1146
    %v1180 = vsel %vm1178, %v1179, %v1146
    %v1181 = vshrl.u32 %v1180, 4
    %v1182 = vand.u32 %v1180, 15
    %v1183 = vsub.s32 0, %v1182
    %v1184 = vsel %vm1178, %v1183, %v1182
    %vm1185 = vcmp.lt.s32.totalorder %v1147, 0
    %v1186 = vsub.s32 0, %v1147
    %v1187 = vsel %vm1185, %v1186, %v1147
    %v1188 = vshrl.u32 %v1187, 4
    %v1189 = vand.u32 %v1187, 15
    %v1190 = vsub.s32 0, %v1189
    %v1191 = vsel %vm1185, %v1190, %v1189
    %vm1192 = vcmp.lt.s32.totalorder %v1148, 0
    %v1193 = vsub.s32 0, %v1148
    %v1194 = vsel %vm1192, %v1193, %v1148
    %v1195 = vshrl.u32 %v1194, 4
    %v1196 = vand.u32 %v1194, 15
    %v1197 = vsub.s32 0, %v1196
    %v1198 = vsel %vm1192, %v1197, %v1196
    %vm1199 = vcmp.lt.s32.totalorder %v1149, 0
    %v1200 = vsub.s32 0, %v1149
    %v1201 = vsel %vm1199, %v1200, %v1149
    %v1202 = vshrl.u32 %v1201, 4
    %v1203 = vand.u32 %v1201, 15
    %v1204 = vsub.s32 0, %v1203
    %v1205 = vsel %vm1199, %v1204, %v1203
    %vm1206 = vcmp.ne.s32.totalorder %v1156, 0
    %vm1207 = vcmp.ne.s32.totalorder %v1163, 0
    %vm1208 = vcmp.ne.s32.totalorder %v1170, 0
    %vm1209 = vcmp.ne.s32.totalorder %v1177, 0
    %vm1210 = vcmp.ne.s32.totalorder %v1184, 0
    %vm1211 = vcmp.ne.s32.totalorder %v1191, 0
    %vm1212 = vcmp.ne.s32.totalorder %v1198, 0
    %vm1213 = vcmp.ne.s32.totalorder %v1205, 0
    %vm1214 = vcmp.lt.s32.totalorder %v1156, 0
    %vm1215 = vcmp.lt.s32.totalorder %v1163, 0
    %vm1216 = vcmp.lt.s32.totalorder %v1170, 0
    %vm1217 = vcmp.lt.s32.totalorder %v1177, 0
    %vm1218 = vcmp.lt.s32.totalorder %v1184, 0
    %vm1219 = vcmp.lt.s32.totalorder %v1191, 0
    %vm1220 = vcmp.lt.s32.totalorder %v1198, 0
    %vm1221 = vcmp.lt.s32.totalorder %v1205, 0
    %vm1222 = vmand %vm1214, %vm1206
    %vm1223 = vmand %vm1215, %vm1207
    %vm1224 = vmand %vm1216, %vm1208
    %vm1225 = vmand %vm1217, %vm1209
    %vm1226 = vmand %vm1218, %vm1210
    %vm1227 = vmand %vm1219, %vm1211
    %vm1228 = vmand %vm1220, %vm1212
    %vm1229 = vmand %vm1221, %vm1213
    %v1230 = vadd.s32 %v1156, 16
    %v1231 = vadd.s32 %v1163, 16
    %v1232 = vadd.s32 %v1170, 16
    %v1233 = vadd.s32 %v1177, 16
    %v1234 = vadd.s32 %v1184, 16
    %v1235 = vadd.s32 %v1191, 16
    %v1236 = vadd.s32 %v1198, 16
    %v1237 = vadd.s32 %v1205, 16
    %v1238 = vsel %vm1222, %v1230, %v1156
    %v1239 = vsel %vm1223, %v1231, %v1163
    %v1240 = vsel %vm1224, %v1232, %v1170
    %v1241 = vsel %vm1225, %v1233, %v1177
    %v1242 = vsel %vm1226, %v1234, %v1184
    %v1243 = vsel %vm1227, %v1235, %v1191
    %v1244 = vsel %vm1228, %v1236, %v1198
    %v1245 = vsel %vm1229, %v1237, %v1205
    %vm1246 = vcmp.lt.s32.totalorder %v1238, 10
    %vm1247 = vcmp.lt.s32.totalorder %v1239, 10
    %vm1248 = vcmp.lt.s32.totalorder %v1240, 10
    %vm1249 = vcmp.lt.s32.totalorder %v1241, 10
    %vm1250 = vcmp.lt.s32.totalorder %v1242, 10
    %vm1251 = vcmp.lt.s32.totalorder %v1243, 10
    %vm1252 = vcmp.lt.s32.totalorder %v1244, 10
    %vm1253 = vcmp.lt.s32.totalorder %v1245, 10
    %v1254 = vsel %vm1246, %v1135, -1.0
    %v1255 = vsel %vm1247, %v1136, -1.0
    %v1256 = vsel %vm1248, %v1137, -1.0
    %v1257 = vsel %vm1249, %v1138, -1.0
    %v1258 = vsel %vm1250, %v1139, -1.0
    %v1259 = vsel %vm1251, %v1140, -1.0
    %v1260 = vsel %vm1252, %v1141, -1.0
    %v1261 = vsel %vm1253, %v1142, -1.0
    %v1262 = vmax.f32 %v1254, %v1255
    %v1263 = vrot.slane %v1262, 4
    %v1264 = vmax.f32 %v1262, %v1263
    %v1265 = vrot.slane %v1264, 2
    %v1266 = vmax.f32 %v1264, %v1265
    %v1267 = vrot.slane %v1266, 1
    %v1268 = vmax.f32 %v1266, %v1267
    %v1269 = vmax.f32 %v1256, %v1257
    %v1270 = vrot.slane %v1269, 4
    %v1271 = vmax.f32 %v1269, %v1270
    %v1272 = vrot.slane %v1271, 2
    %v1273 = vmax.f32 %v1271, %v1272
    %v1274 = vrot.slane %v1273, 1
    %v1275 = vmax.f32 %v1273, %v1274
    %v1276 = vmax.f32 %v1258, %v1259
    %v1277 = vrot.slane %v1276, 4
    %v1278 = vmax.f32 %v1276, %v1277
    %v1279 = vrot.slane %v1278, 2
    %v1280 = vmax.f32 %v1278, %v1279
    %v1281 = vrot.slane %v1280, 1
    %v1282 = vmax.f32 %v1280, %v1281
    %v1283 = vmax.f32 %v1260, %v1261
    %v1284 = vrot.slane %v1283, 4
    %v1285 = vmax.f32 %v1283, %v1284
    %v1286 = vrot.slane %v1285, 2
    %v1287 = vmax.f32 %v1285, %v1286
    %v1288 = vrot.slane %v1287, 1
    %v1289 = vmax.f32 %v1287, %v1288
    %v1290 = vpack.c.bf16 %v1268, %v1268
    %v1291 = vpack.c.bf16 %v1275, %v1275
    %v1292 = vpack.c.bf16 %v1282, %v1282
    %v1293 = vpack.c.bf16 %v1289, %v1289
    %v1294 = vld [vmem:[%s5] sm:$0xff]
    %v1295 = vld [vmem:[%s5 + $0x8] sm:$0xff]
    %v1296 = vld [vmem:[%s5 + $0x10] sm:$0xff]
    %v1297 = vld [vmem:[%s5 + $0x18] sm:$0xff]
    %v1298 = vld [vmem:[%s5 + $0x20] sm:$0xff]
    %v1299 = vld [vmem:[%s5 + $0x28] sm:$0xff]
    %v1300 = vld [vmem:[%s5 + $0x30] sm:$0xff]
    %v1301 = vld [vmem:[%s5 + $0x38] sm:$0xff]
    %v1302 = vld [vmem:[%s5 + $0x40] sm:$0xff]
    %v1303 = vld [vmem:[%s5 + $0x48] sm:$0xff]
    %v1304 = vld [vmem:[%s5 + $0x50] sm:$0xff]
    %v1305 = vld [vmem:[%s5 + $0x58] sm:$0xff]
    %v1306 = vld [vmem:[%s5 + $0x60] sm:$0xff]
    %v1307 = vld [vmem:[%s5 + $0x68] sm:$0xff]
    %v1308 = vld [vmem:[%s5 + $0x70] sm:$0xff]
    %v1309 = vld [vmem:[%s5 + $0x78] sm:$0xff]
    %v1310 = vld [vmem:[%s5 + $0x80] sm:$0xff]
    %v1311 = vld [vmem:[%s5 + $0x88] sm:$0xff]
    %v1312 = vld [vmem:[%s5 + $0x90] sm:$0xff]
    %v1313 = vld [vmem:[%s5 + $0x98] sm:$0xff]
    %v1314 = vld [vmem:[%s5 + $0xa0] sm:$0xff]
    %v1315 = vld [vmem:[%s5 + $0xa8] sm:$0xff]
    %v1316 = vld [vmem:[%s5 + $0xb0] sm:$0xff]
    %v1317 = vld [vmem:[%s5 + $0xb8] sm:$0xff]
    %v1318 = vld [vmem:[%s5 + $0xc0] sm:$0xff]
    %v1319 = vld [vmem:[%s5 + $0xc8] sm:$0xff]
    %v1320 = vld [vmem:[%s5 + $0xd0] sm:$0xff]
    %v1321 = vld [vmem:[%s5 + $0xd8] sm:$0xff]
    %v1322 = vld [vmem:[%s5 + $0xe0] sm:$0xff]
    %v1323 = vld [vmem:[%s5 + $0xe8] sm:$0xff]
    %v1324 = vld [vmem:[%s5 + $0xf0] sm:$0xff]
    %v1325 = vld [vmem:[%s5 + $0xf8] sm:$0xff]
    %v1326 = vld [vmem:[%s6] sm:$0xf]
    %v1328 = vlaneseq
    %v1329 = vshrl.u32 %v1328, 7
    %v1330 = vsub.s32 0, %v1329
    %v1331 = vrot.slane %v1326, %v1330
    %v1332 = vlaneseq
    %v1333 = vshrl.u32 %v1332, 7
    %v1334 = vsub.s32 1, %v1333
    %v1335 = vrot.slane %v1326, %v1334
    %v1336 = vlaneseq
    %v1337 = vshrl.u32 %v1336, 7
    %v1338 = vsub.s32 2, %v1337
    %v1339 = vrot.slane %v1326, %v1338
    %v1340 = vlaneseq
    %v1341 = vshrl.u32 %v1340, 7
    %v1342 = vsub.s32 3, %v1341
    %v1343 = vrot.slane %v1326, %v1342
    %v1352 = vunpack.c.l.b16 %v1290
    %v1353 = vunpack.c.l.b16 %v1291
    %v1354 = vunpack.c.l.b16 %v1292
    %v1355 = vunpack.c.l.b16 %v1293
    %vm1356 = vcmask 1041409
    %v1357 = vsel %vm1356, %v1353, %v1352
    %vm1358 = vcmask 1042434
    %v1359 = vsel %vm1358, %v1354, %v1357
    %vm1360 = vcmask 1043459
    %v1361 = vsel %vm1360, %v1355, %v1359
    %v1362 = vpack.c.b16 %v1361, %v1361
    %v1396 = vunpack.c.l.b16 %v1294
    %v1397 = vunpack.c.h.b16 %v1294
    %v1398 = vunpack.c.l.b16 %v1295
    %v1399 = vunpack.c.h.b16 %v1295
    %v1400 = vunpack.c.l.b16 %v1296
    %v1401 = vunpack.c.h.b16 %v1296
    %v1402 = vunpack.c.l.b16 %v1297
    %v1403 = vunpack.c.h.b16 %v1297
    %v1404 = vunpack.c.l.b16 %v1298
    %v1405 = vunpack.c.h.b16 %v1298
    %v1406 = vunpack.c.l.b16 %v1299
    %v1407 = vunpack.c.h.b16 %v1299
    %v1408 = vunpack.c.l.b16 %v1300
    %v1409 = vunpack.c.h.b16 %v1300
    %v1410 = vunpack.c.l.b16 %v1301
    %v1411 = vunpack.c.h.b16 %v1301
    %v1412 = vunpack.c.l.b16 %v1302
    %v1413 = vunpack.c.h.b16 %v1302
    %v1414 = vunpack.c.l.b16 %v1303
    %v1415 = vunpack.c.h.b16 %v1303
    %v1416 = vunpack.c.l.b16 %v1304
    %v1417 = vunpack.c.h.b16 %v1304
    %v1418 = vunpack.c.l.b16 %v1305
    %v1419 = vunpack.c.h.b16 %v1305
    %v1420 = vunpack.c.l.b16 %v1306
    %v1421 = vunpack.c.h.b16 %v1306
    %v1422 = vunpack.c.l.b16 %v1307
    %v1423 = vunpack.c.h.b16 %v1307
    %v1424 = vunpack.c.l.b16 %v1308
    %v1425 = vunpack.c.h.b16 %v1308
    %v1426 = vunpack.c.l.b16 %v1309
    %v1427 = vunpack.c.h.b16 %v1309
    %v1428 = vunpack.c.l.b16 %v1310
    %v1429 = vunpack.c.h.b16 %v1310
    %v1430 = vunpack.c.l.b16 %v1311
    %v1431 = vunpack.c.h.b16 %v1311
    %v1432 = vunpack.c.l.b16 %v1312
    %v1433 = vunpack.c.h.b16 %v1312
    %v1434 = vunpack.c.l.b16 %v1313
    %v1435 = vunpack.c.h.b16 %v1313
    %v1436 = vunpack.c.l.b16 %v1314
    %v1437 = vunpack.c.h.b16 %v1314
    %v1438 = vunpack.c.l.b16 %v1315
    %v1439 = vunpack.c.h.b16 %v1315
    %v1440 = vunpack.c.l.b16 %v1316
    %v1441 = vunpack.c.h.b16 %v1316
    %v1442 = vunpack.c.l.b16 %v1317
    %v1443 = vunpack.c.h.b16 %v1317
    %v1444 = vunpack.c.l.b16 %v1318
    %v1445 = vunpack.c.h.b16 %v1318
    %v1446 = vunpack.c.l.b16 %v1319
    %v1447 = vunpack.c.h.b16 %v1319
    %v1448 = vunpack.c.l.b16 %v1320
    %v1449 = vunpack.c.h.b16 %v1320
    %v1450 = vunpack.c.l.b16 %v1321
    %v1451 = vunpack.c.h.b16 %v1321
    %v1452 = vunpack.c.l.b16 %v1322
    %v1453 = vunpack.c.h.b16 %v1322
    %v1454 = vunpack.c.l.b16 %v1323
    %v1455 = vunpack.c.h.b16 %v1323
    %v1456 = vunpack.c.l.b16 %v1324
    %v1457 = vunpack.c.h.b16 %v1324
    %v1458 = vunpack.c.l.b16 %v1325
    %v1459 = vunpack.c.h.b16 %v1325
    %v1460 = vpack.c.b16 %v1400, %v1396
    %v1461 = vpack.c.b16 %v1401, %v1397
    %v1462 = vpack.c.b16 %v1402, %v1398
    %v1463 = vpack.c.b16 %v1403, %v1399
    %v1464 = vpack.c.b16 %v1408, %v1404
    %v1465 = vpack.c.b16 %v1409, %v1405
    %v1466 = vpack.c.b16 %v1410, %v1406
    %v1467 = vpack.c.b16 %v1411, %v1407
    %v1468 = vpack.c.b16 %v1416, %v1412
    %v1469 = vpack.c.b16 %v1417, %v1413
    %v1470 = vpack.c.b16 %v1418, %v1414
    %v1471 = vpack.c.b16 %v1419, %v1415
    %v1472 = vpack.c.b16 %v1424, %v1420
    %v1473 = vpack.c.b16 %v1425, %v1421
    %v1474 = vpack.c.b16 %v1426, %v1422
    %v1475 = vpack.c.b16 %v1427, %v1423
    %v1476 = vpack.c.b16 %v1432, %v1428
    %v1477 = vpack.c.b16 %v1433, %v1429
    %v1478 = vpack.c.b16 %v1434, %v1430
    %v1479 = vpack.c.b16 %v1435, %v1431
    %v1480 = vpack.c.b16 %v1440, %v1436
    %v1481 = vpack.c.b16 %v1441, %v1437
    %v1482 = vpack.c.b16 %v1442, %v1438
    %v1483 = vpack.c.b16 %v1443, %v1439
    %v1484 = vpack.c.b16 %v1448, %v1444
    %v1485 = vpack.c.b16 %v1449, %v1445
    %v1486 = vpack.c.b16 %v1450, %v1446
    %v1487 = vpack.c.b16 %v1451, %v1447
    %v1488 = vpack.c.b16 %v1456, %v1452
    %v1489 = vpack.c.b16 %v1457, %v1453
    %v1490 = vpack.c.b16 %v1458, %v1454
    %v1491 = vpack.c.b16 %v1459, %v1455
    %1524 = vmatprep.subr.bf16.mxu0 %v1461
    %1525 = vmatpush1.bf16.msra.mxu0 %v1460
    %1526 = vmatprep.subr.bf16.mxu0 %v1465
    %1527 = vmatpush1.bf16.msra.mxu0 %v1464
    %1528 = vmatprep.subr.bf16.mxu0 %v1469
    %1529 = vmatpush1.bf16.msra.mxu0 %v1468
    %1530 = vmatprep.subr.bf16.mxu0 %v1473
    %1531 = vmatpush1.bf16.msra.mxu0 %v1472
    %1532 = vmatprep.subr.bf16.mxu0 %v1477
    %1533 = vmatpush1.bf16.msra.mxu0 %v1476
    %1534 = vmatprep.subr.bf16.mxu0 %v1481
    %1535 = vmatpush1.bf16.msra.mxu0 %v1480
    %1536 = vmatprep.subr.bf16.mxu0 %v1485
    %1537 = vmatpush1.bf16.msra.mxu0 %v1484
    %1538 = vmatprep.subr.bf16.mxu0 %v1489
    %1539 = vmatpush1.bf16.msra.mxu0 %v1488
    %1540 = vmatprep.subr.bf16.mxu0 0
    %1541 = vmatpush1.bf16.msra.mxu0 0
    %1542 = vmatprep.subr.bf16.mxu0 0
    %1543 = vmatpush1.bf16.msra.mxu0 0
    %1544 = vmatprep.subr.bf16.mxu0 0
    %1545 = vmatpush1.bf16.msra.mxu0 0
    %1546 = vmatprep.subr.bf16.mxu0 0
    %1547 = vmatpush1.bf16.msra.mxu0 0
    %1548 = vmatprep.subr.bf16.mxu0 0
    %1549 = vmatpush1.bf16.msra.mxu0 0
    %1550 = vmatprep.subr.bf16.mxu0 0
    %1551 = vmatpush1.bf16.msra.mxu0 0
    %1552 = vmatprep.subr.bf16.mxu0 0
    %1553 = vmatpush1.bf16.msra.mxu0 0
    %1554 = vmatprep.subr.bf16.mxu0 0
    %1555 = vmatpush1.bf16.msra.mxu0 0
    %1556 = vmatprep.mubr.bf16.mxu0 0
    %1557 = vmatmul.mubr.bf16.gmra.mrb[0].mxu0 %v1362
    %v1558 = vpop.f32.mrb[0].mxu0
    %v1559 = vadd.f32 %v1331, %v1558
    %v1560 = vpop.f32.mrb[0].mxu0
    %v1561 = vadd.f32 %v1335, %v1560
    %v1562 = vpop.f32.mrb[0].mxu0
    %v1563 = vpop.f32.mrb[0].mxu0
    %1564 = vdwg.mxu0
    %1565 = vmatprep.subr.bf16.mxu0 %v1463
    %1566 = vmatpush1.bf16.msra.mxu0 %v1462
    %1567 = vmatprep.subr.bf16.mxu0 %v1467
    %1568 = vmatpush1.bf16.msra.mxu0 %v1466
    %1569 = vmatprep.subr.bf16.mxu0 %v1471
    %1570 = vmatpush1.bf16.msra.mxu0 %v1470
    %1571 = vmatprep.subr.bf16.mxu0 %v1475
    %1572 = vmatpush1.bf16.msra.mxu0 %v1474
    %1573 = vmatprep.subr.bf16.mxu0 %v1479
    %1574 = vmatpush1.bf16.msra.mxu0 %v1478
    %1575 = vmatprep.subr.bf16.mxu0 %v1483
    %1576 = vmatpush1.bf16.msra.mxu0 %v1482
    %1577 = vmatprep.subr.bf16.mxu0 %v1487
    %1578 = vmatpush1.bf16.msra.mxu0 %v1486
    %1579 = vmatprep.subr.bf16.mxu0 %v1491
    %1580 = vmatpush1.bf16.msra.mxu0 %v1490
    %1581 = vmatprep.subr.bf16.mxu0 0
    %1582 = vmatpush1.bf16.msra.mxu0 0
    %1583 = vmatprep.subr.bf16.mxu0 0
    %1584 = vmatpush1.bf16.msra.mxu0 0
    %1585 = vmatprep.subr.bf16.mxu0 0
    %1586 = vmatpush1.bf16.msra.mxu0 0
    %1587 = vmatprep.subr.bf16.mxu0 0
    %1588 = vmatpush1.bf16.msra.mxu0 0
    %1589 = vmatprep.subr.bf16.mxu0 0
    %1590 = vmatpush1.bf16.msra.mxu0 0
    %1591 = vmatprep.subr.bf16.mxu0 0
    %1592 = vmatpush1.bf16.msra.mxu0 0
    %1593 = vmatprep.subr.bf16.mxu0 0
    %1594 = vmatpush1.bf16.msra.mxu0 0
    %1595 = vmatprep.subr.bf16.mxu0 0
    %1596 = vmatpush1.bf16.msra.mxu0 0
    %1597 = vmatprep.mubr.bf16.mxu0 0
    %1598 = vmatmul.mubr.bf16.gmra.mrb[0].mxu0 %v1362
    %v1599 = vpop.f32.mrb[0].mxu0
    %v1600 = vadd.f32 %v1339, %v1599
    %v1601 = vpop.f32.mrb[0].mxu0
    %v1602 = vadd.f32 %v1343, %v1601
    %v1603 = vpop.f32.mrb[0].mxu0
    %v1604 = vpop.f32.mrb[0].mxu0
    %1605 = vdwg.mxu0
    %vm1606 = vcmask 1043456
    %v1607 = vsel %vm1606, %v1559, 0.0
    %v1608 = vrot.slane %v1607, 4
    %v1609 = vadd.f32 %v1607, %v1608
    %v1610 = vrot.slane %v1609, 2
    %v1611 = vadd.f32 %v1609, %v1610
    %v1612 = vrot.slane %v1611, 1
    %v1613 = vadd.f32 %v1611, %v1612
    %v1614 = vsel %vm1606, %v1561, 0.0
    %v1615 = vrot.slane %v1614, 4
    %v1616 = vadd.f32 %v1614, %v1615
    %v1617 = vrot.slane %v1616, 2
    %v1618 = vadd.f32 %v1616, %v1617
    %v1619 = vrot.slane %v1618, 1
    %v1620 = vadd.f32 %v1618, %v1619
    %v1621 = vsel %vm1606, %v1600, 0.0
    %v1622 = vrot.slane %v1621, 4
    %v1623 = vadd.f32 %v1621, %v1622
    %v1624 = vrot.slane %v1623, 2
    %v1625 = vadd.f32 %v1623, %v1624
    %v1626 = vrot.slane %v1625, 1
    %v1627 = vadd.f32 %v1625, %v1626
    %v1628 = vsel %vm1606, %v1602, 0.0
    %v1629 = vrot.slane %v1628, 4
    %v1630 = vadd.f32 %v1628, %v1629
    %v1631 = vrot.slane %v1630, 2
    %v1632 = vadd.f32 %v1630, %v1631
    %v1633 = vrot.slane %v1632, 1
    %v1634 = vadd.f32 %v1632, %v1633
    %v1635 = vrcp.pop 4.0
    %v1636 = vmul.f32 %v1613, %v1635
    %v1637 = vmul.f32 %v1620, %v1635
    %v1638 = vmul.f32 %v1627, %v1635
    %v1639 = vmul.f32 %v1634, %v1635
    %v1640 = vsub.f32 %v1559, %v1636
    %v1641 = vsub.f32 %v1561, %v1637
    %v1642 = vsub.f32 %v1600, %v1638
    %v1643 = vsub.f32 %v1602, %v1639
    %v1644 = vmul.f32 %v1640, %v1640
    %v1645 = vmul.f32 %v1641, %v1641
    %v1646 = vmul.f32 %v1642, %v1642
    %v1647 = vmul.f32 %v1643, %v1643
    %v1648 = vsel %vm1606, %v1644, 0.0
    %v1649 = vrot.slane %v1648, 4
    %v1650 = vadd.f32 %v1648, %v1649
    %v1651 = vrot.slane %v1650, 2
    %v1652 = vadd.f32 %v1650, %v1651
    %v1653 = vrot.slane %v1652, 1
    %v1654 = vadd.f32 %v1652, %v1653
    %v1655 = vsel %vm1606, %v1645, 0.0
    %v1656 = vrot.slane %v1655, 4
    %v1657 = vadd.f32 %v1655, %v1656
    %v1658 = vrot.slane %v1657, 2
    %v1659 = vadd.f32 %v1657, %v1658
    %v1660 = vrot.slane %v1659, 1
    %v1661 = vadd.f32 %v1659, %v1660
    %v1662 = vsel %vm1606, %v1646, 0.0
    %v1663 = vrot.slane %v1662, 4
    %v1664 = vadd.f32 %v1662, %v1663
    %v1665 = vrot.slane %v1664, 2
    %v1666 = vadd.f32 %v1664, %v1665
    %v1667 = vrot.slane %v1666, 1
    %v1668 = vadd.f32 %v1666, %v1667
    %v1669 = vsel %vm1606, %v1647, 0.0
    %v1670 = vrot.slane %v1669, 4
    %v1671 = vadd.f32 %v1669, %v1670
    %v1672 = vrot.slane %v1671, 2
    %v1673 = vadd.f32 %v1671, %v1672
    %v1674 = vrot.slane %v1673, 1
    %v1675 = vadd.f32 %v1673, %v1674
    %v1676 = vmul.f32 %v1654, %v1635
    %v1677 = vmul.f32 %v1661, %v1635
    %v1678 = vmul.f32 %v1668, %v1635
    %v1679 = vmul.f32 %v1675, %v1635
    %v1680 = vadd.f32 %v1676, 1e-05
    %v1681 = vadd.f32 %v1677, 1e-05
    %v1682 = vadd.f32 %v1678, 1e-05
    %v1683 = vadd.f32 %v1679, 1e-05
    %v1684 = vrsqrt.pop %v1680
    %v1685 = vrsqrt.pop %v1681
    %v1686 = vrsqrt.pop %v1682
    %v1687 = vrsqrt.pop %v1683
    %v1688 = vmul.f32 %v1640, %v1684
    %v1689 = vmul.f32 %v1641, %v1685
    %v1690 = vmul.f32 %v1642, %v1686
    %v1691 = vmul.f32 %v1643, %v1687
    %v1692 = vld [vmem:[%s7] sm:$0xf]
    %v1694 = vlaneseq
    %v1695 = vshrl.u32 %v1694, 7
    %v1696 = vsub.s32 0, %v1695
    %v1697 = vrot.slane %v1692, %v1696
    %v1698 = vlaneseq
    %v1699 = vshrl.u32 %v1698, 7
    %v1700 = vsub.s32 1, %v1699
    %v1701 = vrot.slane %v1692, %v1700
    %v1702 = vlaneseq
    %v1703 = vshrl.u32 %v1702, 7
    %v1704 = vsub.s32 2, %v1703
    %v1705 = vrot.slane %v1692, %v1704
    %v1706 = vlaneseq
    %v1707 = vshrl.u32 %v1706, 7
    %v1708 = vsub.s32 3, %v1707
    %v1709 = vrot.slane %v1692, %v1708
    %v1714 = vmul.f32 %v1688, %v1697
    %v1715 = vmul.f32 %v1689, %v1701
    %v1716 = vmul.f32 %v1690, %v1705
    %v1717 = vmul.f32 %v1691, %v1709
    %v1718 = vld [vmem:[%s8] sm:$0xf]
    %v1720 = vlaneseq
    %v1721 = vshrl.u32 %v1720, 7
    %v1722 = vsub.s32 0, %v1721
    %v1723 = vrot.slane %v1718, %v1722
    %v1724 = vlaneseq
    %v1725 = vshrl.u32 %v1724, 7
    %v1726 = vsub.s32 1, %v1725
    %v1727 = vrot.slane %v1718, %v1726
    %v1728 = vlaneseq
    %v1729 = vshrl.u32 %v1728, 7
    %v1730 = vsub.s32 2, %v1729
    %v1731 = vrot.slane %v1718, %v1730
    %v1732 = vlaneseq
    %v1733 = vshrl.u32 %v1732, 7
    %v1734 = vsub.s32 3, %v1733
    %v1735 = vrot.slane %v1718, %v1734
    %v1740 = vadd.f32 %v1714, %v1723
    %v1741 = vadd.f32 %v1715, %v1727
    %v1742 = vadd.f32 %v1716, %v1731
    %v1743 = vadd.f32 %v1717, %v1735
    %v1744 = vpack.c.bf16 %v1740, %v1740
    %v1745 = vpack.c.bf16 %v1741, %v1741
    %v1746 = vpack.c.bf16 %v1742, %v1742
    %v1747 = vpack.c.bf16 %v1743, %v1743
    %v1748 = vld [vmem:[%s9] sm:$0xf]
    %v1749 = vld [vmem:[%s9 + $0x4] sm:$0xf]
    %v1750 = vld [vmem:[%s9 + $0x8] sm:$0xf]
    %v1751 = vld [vmem:[%s9 + $0xc] sm:$0xf]
    %v1752 = vld [vmem:[%s9 + $0x10] sm:$0xf]
    %v1753 = vld [vmem:[%s9 + $0x14] sm:$0xf]
    %v1754 = vld [vmem:[%s9 + $0x18] sm:$0xf]
    %v1755 = vld [vmem:[%s9 + $0x1c] sm:$0xf]
    %v1756 = vld [vmem:[%s9 + $0x20] sm:$0xf]
    %v1757 = vld [vmem:[%s9 + $0x24] sm:$0xf]
    %v1758 = vld [vmem:[%s9 + $0x28] sm:$0xf]
    %v1759 = vld [vmem:[%s9 + $0x2c] sm:$0xf]
    %v1760 = vld [vmem:[%s9 + $0x30] sm:$0xf]
    %v1761 = vld [vmem:[%s9 + $0x34] sm:$0xf]
    %v1762 = vld [vmem:[%s9 + $0x38] sm:$0xf]
    %v1763 = vld [vmem:[%s9 + $0x3c] sm:$0xf]
    %v1764 = vld [vmem:[%s9 + $0x40] sm:$0xf]
    %v1765 = vld [vmem:[%s9 + $0x44] sm:$0xf]
    %v1766 = vld [vmem:[%s9 + $0x48] sm:$0xf]
    %v1767 = vld [vmem:[%s9 + $0x4c] sm:$0xf]
    %v1768 = vld [vmem:[%s9 + $0x50] sm:$0xf]
    %v1769 = vld [vmem:[%s9 + $0x54] sm:$0xf]
    %v1770 = vld [vmem:[%s9 + $0x58] sm:$0xf]
    %v1771 = vld [vmem:[%s9 + $0x5c] sm:$0xf]
    %v1772 = vld [vmem:[%s9 + $0x60] sm:$0xf]
    %v1773 = vld [vmem:[%s9 + $0x64] sm:$0xf]
    %v1774 = vld [vmem:[%s9 + $0x68] sm:$0xf]
    %v1775 = vld [vmem:[%s9 + $0x6c] sm:$0xf]
    %v1776 = vld [vmem:[%s9 + $0x70] sm:$0xf]
    %v1777 = vld [vmem:[%s9 + $0x74] sm:$0xf]
    %v1778 = vld [vmem:[%s9 + $0x78] sm:$0xf]
    %v1779 = vld [vmem:[%s9 + $0x7c] sm:$0xf]
    %v1780 = vld [vmem:[%s9 + $0x80] sm:$0xf]
    %v1781 = vld [vmem:[%s9 + $0x84] sm:$0xf]
    %v1782 = vld [vmem:[%s9 + $0x88] sm:$0xf]
    %v1783 = vld [vmem:[%s9 + $0x8c] sm:$0xf]
    %v1784 = vld [vmem:[%s9 + $0x90] sm:$0xf]
    %v1785 = vld [vmem:[%s9 + $0x94] sm:$0xf]
    %v1786 = vld [vmem:[%s9 + $0x98] sm:$0xf]
    %v1787 = vld [vmem:[%s9 + $0x9c] sm:$0xf]
    %v1788 = vld [vmem:[%s9 + $0xa0] sm:$0xf]
    %v1789 = vld [vmem:[%s9 + $0xa4] sm:$0xf]
    %v1790 = vld [vmem:[%s9 + $0xa8] sm:$0xf]
    %v1791 = vld [vmem:[%s9 + $0xac] sm:$0xf]
    %v1792 = vld [vmem:[%s9 + $0xb0] sm:$0xf]
    %v1793 = vld [vmem:[%s9 + $0xb4] sm:$0xf]
    %v1794 = vld [vmem:[%s9 + $0xb8] sm:$0xf]
    %v1795 = vld [vmem:[%s9 + $0xbc] sm:$0xf]
    %v1796 = vld [vmem:[%s9 + $0xc0] sm:$0xf]
    %v1797 = vld [vmem:[%s9 + $0xc4] sm:$0xf]
    %v1798 = vld [vmem:[%s9 + $0xc8] sm:$0xf]
    %v1799 = vld [vmem:[%s9 + $0xcc] sm:$0xf]
    %v1800 = vld [vmem:[%s9 + $0xd0] sm:$0xf]
    %v1801 = vld [vmem:[%s9 + $0xd4] sm:$0xf]
    %v1802 = vld [vmem:[%s9 + $0xd8] sm:$0xf]
    %v1803 = vld [vmem:[%s9 + $0xdc] sm:$0xf]
    %v1804 = vld [vmem:[%s9 + $0xe0] sm:$0xf]
    %v1805 = vld [vmem:[%s9 + $0xe4] sm:$0xf]
    %v1806 = vld [vmem:[%s9 + $0xe8] sm:$0xf]
    %v1807 = vld [vmem:[%s9 + $0xec] sm:$0xf]
    %v1808 = vld [vmem:[%s9 + $0xf0] sm:$0xf]
    %v1809 = vld [vmem:[%s9 + $0xf4] sm:$0xf]
    %v1810 = vld [vmem:[%s9 + $0xf8] sm:$0xf]
    %v1811 = vld [vmem:[%s9 + $0xfc] sm:$0xf]
    %v1812 = vld [vmem:[%s10] sm:$0x1]
    %v1814 = vlaneseq
    %v1815 = vshrl.u32 %v1814, 7
    %v1816 = vsub.s32 0, %v1815
    %v1817 = vrot.slane %v1812, %v1816
    %v1883 = vunpack.c.l.b16 %v1748
    %v1884 = vunpack.c.l.b16 %v1749
    %v1885 = vunpack.c.l.b16 %v1750
    %v1886 = vunpack.c.l.b16 %v1751
    %v1887 = vunpack.c.l.b16 %v1752
    %v1888 = vunpack.c.l.b16 %v1753
    %v1889 = vunpack.c.l.b16 %v1754
    %v1890 = vunpack.c.l.b16 %v1755
    %v1891 = vunpack.c.l.b16 %v1756
    %v1892 = vunpack.c.l.b16 %v1757
    %v1893 = vunpack.c.l.b16 %v1758
    %v1894 = vunpack.c.l.b16 %v1759
    %v1895 = vunpack.c.l.b16 %v1760
    %v1896 = vunpack.c.l.b16 %v1761
    %v1897 = vunpack.c.l.b16 %v1762
    %v1898 = vunpack.c.l.b16 %v1763
    %v1899 = vunpack.c.l.b16 %v1764
    %v1900 = vunpack.c.l.b16 %v1765
    %v1901 = vunpack.c.l.b16 %v1766
    %v1902 = vunpack.c.l.b16 %v1767
    %v1903 = vunpack.c.l.b16 %v1768
    %v1904 = vunpack.c.l.b16 %v1769
    %v1905 = vunpack.c.l.b16 %v1770
    %v1906 = vunpack.c.l.b16 %v1771
    %v1907 = vunpack.c.l.b16 %v1772
    %v1908 = vunpack.c.l.b16 %v1773
    %v1909 = vunpack.c.l.b16 %v1774
    %v1910 = vunpack.c.l.b16 %v1775
    %v1911 = vunpack.c.l.b16 %v1776
    %v1912 = vunpack.c.l.b16 %v1777
    %v1913 = vunpack.c.l.b16 %v1778
    %v1914 = vunpack.c.l.b16 %v1779
    %v1915 = vunpack.c.l.b16 %v1780
    %v1916 = vunpack.c.l.b16 %v1781
    %v1917 = vunpack.c.l.b16 %v1782
    %v1918 = vunpack.c.l.b16 %v1783
    %v1919 = vunpack.c.l.b16 %v1784
    %v1920 = vunpack.c.l.b16 %v1785
    %v1921 = vunpack.c.l.b16 %v1786
    %v1922 = vunpack.c.l.b16 %v1787
    %v1923 = vunpack.c.l.b16 %v1788
    %v1924 = vunpack.c.l.b16 %v1789
    %v1925 = vunpack.c.l.b16 %v1790
    %v1926 = vunpack.c.l.b16 %v1791
    %v1927 = vunpack.c.l.b16 %v1792
    %v1928 = vunpack.c.l.b16 %v1793
    %v1929 = vunpack.c.l.b16 %v1794
    %v1930 = vunpack.c.l.b16 %v1795
    %v1931 = vunpack.c.l.b16 %v1796
    %v1932 = vunpack.c.l.b16 %v1797
    %v1933 = vunpack.c.l.b16 %v1798
    %v1934 = vunpack.c.l.b16 %v1799
    %v1935 = vunpack.c.l.b16 %v1800
    %v1936 = vunpack.c.l.b16 %v1801
    %v1937 = vunpack.c.l.b16 %v1802
    %v1938 = vunpack.c.l.b16 %v1803
    %v1939 = vunpack.c.l.b16 %v1804
    %v1940 = vunpack.c.l.b16 %v1805
    %v1941 = vunpack.c.l.b16 %v1806
    %v1942 = vunpack.c.l.b16 %v1807
    %v1943 = vunpack.c.l.b16 %v1808
    %v1944 = vunpack.c.l.b16 %v1809
    %v1945 = vunpack.c.l.b16 %v1810
    %v1946 = vunpack.c.l.b16 %v1811
    %v1947 = vpack.c.b16 %v1884, %v1883
    %v1948 = vpack.c.b16 %v1886, %v1885
    %v1949 = vpack.c.b16 %v1888, %v1887
    %v1950 = vpack.c.b16 %v1890, %v1889
    %v1951 = vpack.c.b16 %v1892, %v1891
    %v1952 = vpack.c.b16 %v1894, %v1893
    %v1953 = vpack.c.b16 %v1896, %v1895
    %v1954 = vpack.c.b16 %v1898, %v1897
    %v1955 = vpack.c.b16 %v1900, %v1899
    %v1956 = vpack.c.b16 %v1902, %v1901
    %v1957 = vpack.c.b16 %v1904, %v1903
    %v1958 = vpack.c.b16 %v1906, %v1905
    %v1959 = vpack.c.b16 %v1908, %v1907
    %v1960 = vpack.c.b16 %v1910, %v1909
    %v1961 = vpack.c.b16 %v1912, %v1911
    %v1962 = vpack.c.b16 %v1914, %v1913
    %v1963 = vpack.c.b16 %v1916, %v1915
    %v1964 = vpack.c.b16 %v1918, %v1917
    %v1965 = vpack.c.b16 %v1920, %v1919
    %v1966 = vpack.c.b16 %v1922, %v1921
    %v1967 = vpack.c.b16 %v1924, %v1923
    %v1968 = vpack.c.b16 %v1926, %v1925
    %v1969 = vpack.c.b16 %v1928, %v1927
    %v1970 = vpack.c.b16 %v1930, %v1929
    %v1971 = vpack.c.b16 %v1932, %v1931
    %v1972 = vpack.c.b16 %v1934, %v1933
    %v1973 = vpack.c.b16 %v1936, %v1935
    %v1974 = vpack.c.b16 %v1938, %v1937
    %v1975 = vpack.c.b16 %v1940, %v1939
    %v1976 = vpack.c.b16 %v1942, %v1941
    %v1977 = vpack.c.b16 %v1944, %v1943
    %v1978 = vpack.c.b16 %v1946, %v1945
    %2011 = vmatprep.subr.bf16.mxu0 0
    %2012 = vmatpush1.bf16.msra.mxu0 %v1947
    %2013 = vmatprep.subr.bf16.mxu0 0
    %2014 = vmatpush1.bf16.msra.mxu0 %v1948
    %2015 = vmatprep.subr.bf16.mxu0 0
    %2016 = vmatpush1.bf16.msra.mxu0 %v1949
    %2017 = vmatprep.subr.bf16.mxu0 0
    %2018 = vmatpush1.bf16.msra.mxu0 %v1950
    %2019 = vmatprep.subr.bf16.mxu0 0
    %2020 = vmatpush1.bf16.msra.mxu0 %v1951
    %2021 = vmatprep.subr.bf16.mxu0 0
    %2022 = vmatpush1.bf16.msra.mxu0 %v1952
    %2023 = vmatprep.subr.bf16.mxu0 0
    %2024 = vmatpush1.bf16.msra.mxu0 %v1953
    %2025 = vmatprep.subr.bf16.mxu0 0
    %2026 = vmatpush1.bf16.msra.mxu0 %v1954
    %2027 = vmatprep.subr.bf16.mxu0 0
    %2028 = vmatpush1.bf16.msra.mxu0 %v1955
    %2029 = vmatprep.subr.bf16.mxu0 0
    %2030 = vmatpush1.bf16.msra.mxu0 %v1956
    %2031 = vmatprep.subr.bf16.mxu0 0
    %2032 = vmatpush1.bf16.msra.mxu0 %v1957
    %2033 = vmatprep.subr.bf16.mxu0 0
    %2034 = vmatpush1.bf16.msra.mxu0 %v1958
    %2035 = vmatprep.subr.bf16.mxu0 0
    %2036 = vmatpush1.bf16.msra.mxu0 %v1959
    %2037 = vmatprep.subr.bf16.mxu0 0
    %2038 = vmatpush1.bf16.msra.mxu0 %v1960
    %2039 = vmatprep.subr.bf16.mxu0 0
    %2040 = vmatpush1.bf16.msra.mxu0 %v1961
    %2041 = vmatprep.subr.bf16.mxu0 0
    %2042 = vmatpush1.bf16.msra.mxu0 %v1962
    %2043 = vmatprep.mubr.bf16.mxu0 %v1745
    %2044 = vmatmul.mubr.bf16.gmra.mrb[0].mxu0 %v1744
    %v2045 = vpop.f32.mrb[0].mxu0
    %v2046 = vadd.f32 %v1817, %v2045
    %v2047 = vpop.f32.mrb[0].mxu0
    %v2048 = vpop.f32.mrb[0].mxu0
    %v2049 = vpop.f32.mrb[0].mxu0
    %2050 = vdwg.mxu0
    %2051 = vmatprep.subr.bf16.mxu0 0
    %2052 = vmatpush1.bf16.msra.mxu0 %v1963
    %2053 = vmatprep.subr.bf16.mxu0 0
    %2054 = vmatpush1.bf16.msra.mxu0 %v1964
    %2055 = vmatprep.subr.bf16.mxu0 0
    %2056 = vmatpush1.bf16.msra.mxu0 %v1965
    %2057 = vmatprep.subr.bf16.mxu0 0
    %2058 = vmatpush1.bf16.msra.mxu0 %v1966
    %2059 = vmatprep.subr.bf16.mxu0 0
    %2060 = vmatpush1.bf16.msra.mxu0 %v1967
    %2061 = vmatprep.subr.bf16.mxu0 0
    %2062 = vmatpush1.bf16.msra.mxu0 %v1968
    %2063 = vmatprep.subr.bf16.mxu0 0
    %2064 = vmatpush1.bf16.msra.mxu0 %v1969
    %2065 = vmatprep.subr.bf16.mxu0 0
    %2066 = vmatpush1.bf16.msra.mxu0 %v1970
    %2067 = vmatprep.subr.bf16.mxu0 0
    %2068 = vmatpush1.bf16.msra.mxu0 %v1971
    %2069 = vmatprep.subr.bf16.mxu0 0
    %2070 = vmatpush1.bf16.msra.mxu0 %v1972
    %2071 = vmatprep.subr.bf16.mxu0 0
    %2072 = vmatpush1.bf16.msra.mxu0 %v1973
    %2073 = vmatprep.subr.bf16.mxu0 0
    %2074 = vmatpush1.bf16.msra.mxu0 %v1974
    %2075 = vmatprep.subr.bf16.mxu0 0
    %2076 = vmatpush1.bf16.msra.mxu0 %v1975
    %2077 = vmatprep.subr.bf16.mxu0 0
    %2078 = vmatpush1.bf16.msra.mxu0 %v1976
    %2079 = vmatprep.subr.bf16.mxu0 0
    %2080 = vmatpush1.bf16.msra.mxu0 %v1977
    %2081 = vmatprep.subr.bf16.mxu0 0
    %2082 = vmatpush1.bf16.msra.mxu0 %v1978
    %2083 = vmatprep.mubr.bf16.mxu0 %v1747
    %2084 = vmatmul.mubr.bf16.gmra.mrb[0].mxu0 %v1746
    %v2085 = vpop.f32.mrb[0].mxu0
    %v2086 = vadd.f32 %v2046, %v2085
    %v2087 = vpop.f32.mrb[0].mxu0
    %v2088 = vpop.f32.mrb[0].mxu0
    %v2089 = vpop.f32.mrb[0].mxu0
    %2090 = vdwg.mxu0
    %v2091 = vxor.u32 %v2086, 2147483648
    %v2092 = vmul.f32 %v2091, 1.442695
    %v2093 = vpow.pop %v2092
    %v2094 = vadd.f32 %v2093, 1.0
    %v2095 = vrcp.pop %v2094
    %v2096 = vmul.f32 1.0, %v2095
    %2097 = vst [vmem:[#allocation2] sm:$0xf] %v2096
    // Predicated region
    $region46: #{conv_model_forward.1} parent=1 // pred_check
      _
    $region47: #{conv_model_forward.1} parent=1 // pred_check_branch
      %2099 = sbr.rel (0) target = $region49
    $region48: #{conv_model_forward.1} parent=1 // pred_region
      %s2101 = ssub.s32 64, 64
      %2102 = vsyncadd [#allocation3], %s2101
      %s2104 = sshll.u32 [#allocation2], 4
      %s2105 = int_to_ptr.vmem [resolvable:$true] %s2104
      %2107 = dma.vmem_to_hbm [thread:$0]  %s2105, 64, %s11, [#allocation3]
    $region49: #{conv_model_forward.1} parent=1 // pred_fallthru
      _
    // Predicated region
    $region50: #{conv_model_forward.1} parent=1 // pred_check
      _
    $region51: #{conv_model_forward.1} parent=1 // pred_check_branch
      %2109 = sbr.rel (0) target = $region53
    $region52: #{conv_model_forward.1} parent=1 // pred_region
      %2110 = dma.done [#allocation3], 64
    $region53: #{conv_model_forward.1} parent=1 // pred_fallthru
      _
    %2111 = vsyncpa [#allocation3], 1

</llo_original>
